<compile_context>
chip_gen: v6e
topology: v6e:2x2x1
jax: 0.10.0
libtpu: 0.0.40
codegen_flags: <defaults>
</compile_context>

<pallas_src>
import functools

import jax
import jax.numpy as jnp
from jax import lax
from jax.experimental import pallas as pl
from jax.experimental.pallas import tpu as pltpu

EPS = 1e-5


def _basic_block_kernel(xp_ref, xres_ref, m1_ref, m2_ref,
                        g1_ref, b1_ref, g2_ref, b2_ref, fold_ref,
                        out_ref, pad2_ref, *, n, h, w, c):
    """Whole BasicBlock in one invocation (small shapes -> all VMEM resident).

    xp_ref  : (N, H+2, (W+2)*C)  zero-padded input, lane-dense row slabs
    xres_ref: (N*H, W*C)         unpadded input (identity residual), lane-dense
    m*_ref  : (3, (W+2)*C, W*C)  banded conv matrices, one per kernel row kh
    g*_ref  : (1, W*C)           BN gamma tiled per lane (gamma[lane % C])
    b*_ref  : (1, W*C)           BN beta tiled per lane
    fold_ref: (W*C, W*C)         fold[i, j] = 1 iff i % C == j % C
    out_ref : (N*H, W*C)
    pad2_ref: (N, H+2, (W+2)*C)  VMEM scratch: zero-halo staging for conv2
    """
    N, H, W, C = n, h, w, c
    Hp = H + 2
    WC = W * C
    WpC = (W + 2) * C
    inv_count = 1.0 / float(N * H * W)

    def conv(src_ref, m_ref):
        # 3x3 conv as 3 row-shifted matmuls; output is lane-dense (N*H, W*C).
        acc = jnp.zeros((N * H, WC), jnp.float32)
        for kh in range(3):
            rows = src_ref[:, kh:kh + H, :]           # (N, H, (W+2)*C)
            lhs = rows.reshape(N * H, WpC)            # leading-dim merge only
            acc = acc + jnp.dot(lhs, m_ref[kh],
                                preferred_element_type=jnp.float32)
        return acc

    def bn_scale_shift(hv, g_ref, b_ref):
        # Training-mode BN folded to a single affine: one pass over hv gives
        # sum and sum-of-squares; the fold matmul reduces across the W lane
        # groups AND broadcasts each channel's totals back to its lanes.
        s1 = jnp.sum(jnp.dot(hv, fold_ref[...],
                             preferred_element_type=jnp.float32),
                     axis=0, keepdims=True)                     # (1, W*C)
        s2 = jnp.sum(jnp.dot(hv * hv, fold_ref[...],
                             preferred_element_type=jnp.float32),
                     axis=0, keepdims=True)                     # (1, W*C)
        mean = s1 * inv_count
        var = s2 * inv_count - mean * mean
        scale = g_ref[...] * lax.rsqrt(var + EPS)
        shift = b_ref[...] - mean * scale
        return scale, shift

    # ---- conv1 -> bn1 -> relu (all lane-dense) ----
    h1 = conv(xp_ref, m1_ref)
    sc1, sh1 = bn_scale_shift(h1, g1_ref, b1_ref)
    h1 = jnp.maximum(h1 * sc1 + sh1, 0.0)

    # ---- stage h1 into the padded scratch for conv2 ----
    # Only the 1-element halo is zeroed; the interior is fully overwritten.
    zrow = jnp.zeros((N, 1, WpC), jnp.float32)
    pad2_ref[:, 0:1, :] = zrow
    pad2_ref[:, Hp - 1:Hp, :] = zrow
    zcol = jnp.zeros((N, Hp, C), jnp.float32)
    pad2_ref[:, :, 0:C] = zcol
    pad2_ref[:, :, C + WC:WpC] = zcol
    pad2_ref[:, 1:H + 1, C:C + WC] = h1.reshape(N, H, WC)

    # ---- conv2 -> bn2 -> (+identity residual) -> relu, fused epilogue ----
    h2 = conv(pad2_ref, m2_ref)
    sc2, sh2 = bn_scale_shift(h2, g2_ref, b2_ref)
    out = jnp.maximum(h2 * sc2 + sh2 + xres_ref[...], 0.0)
    out_ref[...] = out.astype(out_ref.dtype)


def _conv_row_matrices(w_oihw, width, cin):
    """PyTorch (Cout, Cin, 3, 3) weights -> (3, (W+2)*Cin, W*Cout) row matrices.

    m[kh][(w+kw)*Cin + ci, w*Cout + co] = weight[co, ci, kh, kw]; multiplying a
    padded image row (flattened (W+2)*Cin) by m[kh] yields that row's full
    contribution to the output row, already in lane-dense (W*Cout) layout.
    """
    wp = width + 2
    cout = w_oihw.shape[0]
    wt = jnp.transpose(w_oihw, (2, 3, 1, 0)).astype(jnp.float32)  # (kh,kw,ci,co)
    eye = jnp.eye(wp, dtype=jnp.float32)
    mats = []
    for kh in range(3):
        m = jnp.zeros((wp * cin, width * cout), jnp.float32)
        for kw in range(3):
            sel = eye[:, kw:kw + width]          # sel[w+kw, w] = 1
            m = m + jnp.kron(sel, wt[kh, kw])
        mats.append(m)
    return jnp.stack(mats, axis=0)


def basic_block_forward(x_nchw, params):
    """BasicBlock forward. x_nchw: (N, C, H, W); stride=1, downsample=None."""
    x = jnp.transpose(x_nchw, (0, 2, 3, 1)).astype(jnp.float32)   # -> NHWC
    N, H, W, C = x.shape
    Hp = H + 2
    WC, WpC = W * C, (W + 2) * C

    # Layout plumbing (wrapper-side, pure XLA): padded row slabs + lane-dense
    # residual so the kernel never re-slices / re-layouts the input.
    xp_slab = jnp.pad(x, ((0, 0), (1, 1), (1, 1), (0, 0))).reshape(N, Hp, WpC)
    x_res = x.reshape(N * H, WC)

    m1 = _conv_row_matrices(params["conv1_w"], W, C)
    m2 = _conv_row_matrices(params["conv2_w"], W, C)

    def lane_tile(v):  # (C,) -> (1, W*C) with element j = v[j % C]
        return jnp.tile(v.astype(jnp.float32).reshape(-1), W).reshape(1, WC)

    g1, b1 = lane_tile(params["bn1_g"]), lane_tile(params["bn1_b"])
    g2, b2 = lane_tile(params["bn2_g"]), lane_tile(params["bn2_b"])

    lane = jnp.arange(WC)
    fold = (lane[:, None] % C == lane[None, :] % C).astype(jnp.float32)

    vmem = pl.BlockSpec(memory_space=pltpu.MemorySpace.VMEM)
    kernel = functools.partial(_basic_block_kernel, n=N, h=H, w=W, c=C)

    # TODO(synk): for non-toy shapes, tile over H row-bands with a grid
    # (parallel axis so v7x's two TensorCores are used) and a two-pass /
    # accumulator BN reduction across bands; batch-stat BN makes naive
    # spatial tiling silently wrong, so it is kept monolithic here.
    out_slab = pl.pallas_call(
        kernel,
        out_shape=jax.ShapeDtypeStruct((N * H, WC), jnp.float32),
        in_specs=[vmem] * 9,
        out_specs=vmem,
        scratch_shapes=[pltpu.VMEM((N, Hp, WpC), jnp.float32)],
        compiler_params=pltpu.CompilerParams(
            vmem_limit_bytes=32 * 1024 * 1024),
    )(xp_slab, x_res, m1, m2, g1, b1, g2, b2, fold)

    return jnp.transpose(out_slab.reshape(N, H, W, C), (0, 3, 1, 2))  # -> NCHW


# ----------------------- pure-JAX reference (for checking) -----------------
def _reference_forward(x_nchw, params):
    def conv(x, w):  # x NCHW, w (Cout, Cin, 3, 3)
        return lax.conv_general_dilated(
            x, w, window_strides=(1, 1), padding=((1, 1), (1, 1)),
            dimension_numbers=("NCHW", "OIHW", "NCHW"))

    def bn(x, g, b):
        mean = jnp.mean(x, axis=(0, 2, 3), keepdims=True)
        var = jnp.mean((x - mean) ** 2, axis=(0, 2, 3), keepdims=True)
        return (x - mean) * lax.rsqrt(var + EPS) * g.reshape(1, -1, 1, 1) \
            + b.reshape(1, -1, 1, 1)

    out = conv(x_nchw, params["conv1_w"])
    out = jnp.maximum(bn(out, params["bn1_g"], params["bn1_b"]), 0.0)
    out = conv(out, params["conv2_w"])
    out = bn(out, params["bn2_g"], params["bn2_b"])
    return jnp.maximum(out + x_nchw, 0.0)


if __name__ == "__main__":
    # Small shapes: batch=2, inplanes=planes=8, spatial=16x16, stride=1.
    # W*C = 128 makes the working layout exactly lane-dense.
    N, C, H, W = 2, 8, 16, 16
    key = jax.random.PRNGKey(0)
    k_x, k_w1, k_w2 = jax.random.split(key, 3)

    fan_in = C * 3 * 3
    params = {
        # Kaiming-style scale; BN gamma=1 / beta=0 matches nn.BatchNorm2d init.
        "conv1_w": jax.random.normal(k_w1, (C, C, 3, 3), jnp.float32)
                   * (2.0 / fan_in) ** 0.5,
        "conv2_w": jax.random.normal(k_w2, (C, C, 3, 3), jnp.float32)
                   * (2.0 / fan_in) ** 0.5,
        "bn1_g": jnp.ones((C,), jnp.float32),
        "bn1_b": jnp.zeros((C,), jnp.float32),
        "bn2_g": jnp.ones((C,), jnp.float32),
        "bn2_b": jnp.zeros((C,), jnp.float32),
    }
    x = jax.random.normal(k_x, (N, C, H, W), jnp.float32)

    out = jax.block_until_ready(basic_block_forward(x, params))
    ref = jax.block_until_ready(_reference_forward(x, params))

    assert out.shape == (N, C, H, W), out.shape
    assert jnp.allclose(out, ref, atol=1e-3, rtol=1e-3), \
        float(jnp.max(jnp.abs(out - ref)))
    print("KERNEL_OK")
</pallas_src>

<mosaic_0001>
module attributes {stable_mosaic.version = 11 : i64} {
  func.func @_basic_block_kernel(%arg0: memref<2x18x144xf32, #tpu.memory_space<vmem>>, %arg1: memref<32x128xf32, #tpu.memory_space<vmem>>, %arg2: memref<3x144x128xf32, #tpu.memory_space<vmem>>, %arg3: memref<3x144x128xf32, #tpu.memory_space<vmem>>, %arg4: memref<1x128xf32, #tpu.memory_space<vmem>>, %arg5: memref<1x128xf32, #tpu.memory_space<vmem>>, %arg6: memref<1x128xf32, #tpu.memory_space<vmem>>, %arg7: memref<1x128xf32, #tpu.memory_space<vmem>>, %arg8: memref<128x128xf32, #tpu.memory_space<vmem>>, %arg9: memref<32x128xf32, #tpu.memory_space<vmem>>, %arg10: memref<2x18x144xf32, #tpu.memory_space<vmem>>) attributes {dimension_semantics = [], scalar_prefetch = 0 : i64, scratch_operands = 1 : i64, tpu.core_type = #tpu.core_type<tc>} {
    %cst = arith.constant 0.000000e+00 : f32
    %0 = vector.broadcast %cst : f32 to vector<32x128xf32>
    %c0 = arith.constant 0 : index
    %c0_0 = arith.constant 0 : index
    %c0_1 = arith.constant 0 : index
    %1 = vector.load %arg0[%c0, %c0_0, %c0_1] : memref<2x18x144xf32, #tpu.memory_space<vmem>>, vector<2x16x144xf32>
    %2 = vector.shape_cast %1 : vector<2x16x144xf32> to vector<32x144xf32>
    %c0_2 = arith.constant 0 : index
    %c0_3 = arith.constant 0 : index
    %c0_4 = arith.constant 0 : index
    %3 = vector.load %arg2[%c0_2, %c0_3, %c0_4] : memref<3x144x128xf32, #tpu.memory_space<vmem>>, vector<1x144x128xf32>
    %4 = vector.shape_cast %3 : vector<1x144x128xf32> to vector<144x128xf32>
    %cst_5 = arith.constant dense<0.000000e+00> : vector<32x128xf32>
    %5 = tpu.matmul %2, %4, %cst_5 {dimension_numbers = #tpu.dot_dimension_numbers<[1], [0], [0], [1], [0, 0, 1, 1], [], []>} : vector<32x144xf32>, vector<144x128xf32>, vector<32x128xf32> -> vector<32x128xf32>
    %6 = arith.addf %0, %5 : vector<32x128xf32>
    %c0_6 = arith.constant 0 : index
    %c1 = arith.constant 1 : index
    %c0_7 = arith.constant 0 : index
    %7 = vector.load %arg0[%c0_6, %c1, %c0_7] : memref<2x18x144xf32, #tpu.memory_space<vmem>>, vector<2x16x144xf32>
    %8 = vector.shape_cast %7 : vector<2x16x144xf32> to vector<32x144xf32>
    %c1_8 = arith.constant 1 : index
    %c0_9 = arith.constant 0 : index
    %c0_10 = arith.constant 0 : index
    %9 = vector.load %arg2[%c1_8, %c0_9, %c0_10] : memref<3x144x128xf32, #tpu.memory_space<vmem>>, vector<1x144x128xf32>
    %10 = vector.shape_cast %9 : vector<1x144x128xf32> to vector<144x128xf32>
    %cst_11 = arith.constant dense<0.000000e+00> : vector<32x128xf32>
    %11 = tpu.matmul %8, %10, %cst_11 {dimension_numbers = #tpu.dot_dimension_numbers<[1], [0], [0], [1], [0, 0, 1, 1], [], []>} : vector<32x144xf32>, vector<144x128xf32>, vector<32x128xf32> -> vector<32x128xf32>
    %12 = arith.addf %6, %11 : vector<32x128xf32>
    %c0_12 = arith.constant 0 : index
    %c2 = arith.constant 2 : index
    %c0_13 = arith.constant 0 : index
    %13 = vector.load %arg0[%c0_12, %c2, %c0_13] : memref<2x18x144xf32, #tpu.memory_space<vmem>>, vector<2x16x144xf32>
    %14 = vector.shape_cast %13 : vector<2x16x144xf32> to vector<32x144xf32>
    %c2_14 = arith.constant 2 : index
    %c0_15 = arith.constant 0 : index
    %c0_16 = arith.constant 0 : index
    %15 = vector.load %arg2[%c2_14, %c0_15, %c0_16] : memref<3x144x128xf32, #tpu.memory_space<vmem>>, vector<1x144x128xf32>
    %16 = vector.shape_cast %15 : vector<1x144x128xf32> to vector<144x128xf32>
    %cst_17 = arith.constant dense<0.000000e+00> : vector<32x128xf32>
    %17 = tpu.matmul %14, %16, %cst_17 {dimension_numbers = #tpu.dot_dimension_numbers<[1], [0], [0], [1], [0, 0, 1, 1], [], []>} : vector<32x144xf32>, vector<144x128xf32>, vector<32x128xf32> -> vector<32x128xf32>
    %18 = arith.addf %12, %17 : vector<32x128xf32>
    %c0_18 = arith.constant 0 : index
    %c0_19 = arith.constant 0 : index
    %19 = vector.load %arg8[%c0_18, %c0_19] : memref<128x128xf32, #tpu.memory_space<vmem>>, vector<128x128xf32>
    %cst_20 = arith.constant dense<0.000000e+00> : vector<32x128xf32>
    %20 = tpu.matmul %18, %19, %cst_20 {dimension_numbers = #tpu.dot_dimension_numbers<[1], [0], [0], [1], [0, 0, 1, 1], [], []>} : vector<32x128xf32>, vector<128x128xf32>, vector<32x128xf32> -> vector<32x128xf32>
    %cst_21 = arith.constant dense<0.000000e+00> : vector<128xf32>
    %21 = vector.multi_reduction <add>, %20, %cst_21 [0] : vector<32x128xf32> to vector<128xf32>
    %22 = vector.shape_cast %21 : vector<128xf32> to vector<1x128xf32>
    %23 = arith.mulf %18, %18 : vector<32x128xf32>
    %c0_22 = arith.constant 0 : index
    %c0_23 = arith.constant 0 : index
    %24 = vector.load %arg8[%c0_22, %c0_23] : memref<128x128xf32, #tpu.memory_space<vmem>>, vector<128x128xf32>
    %cst_24 = arith.constant dense<0.000000e+00> : vector<32x128xf32>
    %25 = tpu.matmul %23, %24, %cst_24 {dimension_numbers = #tpu.dot_dimension_numbers<[1], [0], [0], [1], [0, 0, 1, 1], [], []>} : vector<32x128xf32>, vector<128x128xf32>, vector<32x128xf32> -> vector<32x128xf32>
    %cst_25 = arith.constant dense<0.000000e+00> : vector<128xf32>
    %26 = vector.multi_reduction <add>, %25, %cst_25 [0] : vector<32x128xf32> to vector<128xf32>
    %27 = vector.shape_cast %26 : vector<128xf32> to vector<1x128xf32>
    %cst_26 = arith.constant 0.001953125 : f32
    %28 = vector.broadcast %cst_26 : f32 to vector<1x128xf32>
    %29 = arith.mulf %22, %28 : vector<1x128xf32>
    %cst_27 = arith.constant 0.001953125 : f32
    %30 = vector.broadcast %cst_27 : f32 to vector<1x128xf32>
    %31 = arith.mulf %27, %30 : vector<1x128xf32>
    %32 = arith.mulf %29, %29 : vector<1x128xf32>
    %33 = arith.subf %31, %32 : vector<1x128xf32>
    %c0_28 = arith.constant 0 : index
    %c0_29 = arith.constant 0 : index
    %34 = vector.load %arg4[%c0_28, %c0_29] : memref<1x128xf32, #tpu.memory_space<vmem>>, vector<1x128xf32>
    %cst_30 = arith.constant 9.99999974E-6 : f32
    %35 = vector.broadcast %cst_30 : f32 to vector<1x128xf32>
    %36 = arith.addf %33, %35 : vector<1x128xf32>
    %37 = math.rsqrt %36 : vector<1x128xf32>
    %38 = arith.mulf %34, %37 : vector<1x128xf32>
    %c0_31 = arith.constant 0 : index
    %c0_32 = arith.constant 0 : index
    %39 = vector.load %arg5[%c0_31, %c0_32] : memref<1x128xf32, #tpu.memory_space<vmem>>, vector<1x128xf32>
    %40 = arith.mulf %29, %38 : vector<1x128xf32>
    %41 = arith.subf %39, %40 : vector<1x128xf32>
    %42 = vector.broadcast %38 : vector<1x128xf32> to vector<32x128xf32>
    %43 = arith.mulf %18, %42 : vector<32x128xf32>
    %44 = vector.broadcast %41 : vector<1x128xf32> to vector<32x128xf32>
    %45 = arith.addf %43, %44 : vector<32x128xf32>
    %cst_33 = arith.constant 0.000000e+00 : f32
    %46 = vector.broadcast %cst_33 : f32 to vector<32x128xf32>
    %47 = arith.maximumf %45, %46 : vector<32x128xf32>
    %cst_34 = arith.constant 0.000000e+00 : f32
    %48 = vector.broadcast %cst_34 : f32 to vector<2x1x144xf32>
    %c0_35 = arith.constant 0 : index
    %c0_36 = arith.constant 0 : index
    %c0_37 = arith.constant 0 : index
    %49 = vector.load %arg10[%c0_35, %c0_36, %c0_37] : memref<2x18x144xf32, #tpu.memory_space<vmem>>, vector<2x1x144xf32>
    tpu.vector_store %arg10[%c0_35, %c0_36, %c0_37], %48 {strides = array<i32>} : memref<2x18x144xf32, #tpu.memory_space<vmem>>, vector<2x1x144xf32>,
    %c0_38 = arith.constant 0 : index
    %c17 = arith.constant 17 : index
    %c0_39 = arith.constant 0 : index
    %50 = vector.load %arg10[%c0_38, %c17, %c0_39] : memref<2x18x144xf32, #tpu.memory_space<vmem>>, vector<2x1x144xf32>
    tpu.vector_store %arg10[%c0_38, %c17, %c0_39], %48 {strides = array<i32>} : memref<2x18x144xf32, #tpu.memory_space<vmem>>, vector<2x1x144xf32>,
    %cst_40 = arith.constant 0.000000e+00 : f32
    %51 = vector.broadcast %cst_40 : f32 to vector<2x18x8xf32>
    %c0_41 = arith.constant 0 : index
    %c0_42 = arith.constant 0 : index
    %c0_43 = arith.constant 0 : index
    %52 = vector.load %arg10[%c0_41, %c0_42, %c0_43] : memref<2x18x144xf32, #tpu.memory_space<vmem>>, vector<2x18x8xf32>
    tpu.vector_store %arg10[%c0_41, %c0_42, %c0_43], %51 {strides = array<i32>} : memref<2x18x144xf32, #tpu.memory_space<vmem>>, vector<2x18x8xf32>,
    %c0_44 = arith.constant 0 : index
    %c0_45 = arith.constant 0 : index
    %c136 = arith.constant 136 : index
    %53 = vector.load %arg10[%c0_44, %c0_45, %c136] : memref<2x18x144xf32, #tpu.memory_space<vmem>>, vector<2x18x8xf32>
    tpu.vector_store %arg10[%c0_44, %c0_45, %c136], %51 {strides = array<i32>} : memref<2x18x144xf32, #tpu.memory_space<vmem>>, vector<2x18x8xf32>,
    %54 = vector.shape_cast %47 : vector<32x128xf32> to vector<2x16x128xf32>
    %c0_46 = arith.constant 0 : index
    %c1_47 = arith.constant 1 : index
    %c8 = arith.constant 8 : index
    %55 = vector.load %arg10[%c0_46, %c1_47, %c8] : memref<2x18x144xf32, #tpu.memory_space<vmem>>, vector<2x16x128xf32>
    tpu.vector_store %arg10[%c0_46, %c1_47, %c8], %54 {strides = array<i32>} : memref<2x18x144xf32, #tpu.memory_space<vmem>>, vector<2x16x128xf32>,
    %cst_48 = arith.constant 0.000000e+00 : f32
    %56 = vector.broadcast %cst_48 : f32 to vector<32x128xf32>
    %c0_49 = arith.constant 0 : index
    %c0_50 = arith.constant 0 : index
    %c0_51 = arith.constant 0 : index
    %57 = vector.load %arg10[%c0_49, %c0_50, %c0_51] : memref<2x18x144xf32, #tpu.memory_space<vmem>>, vector<2x16x144xf32>
    %58 = vector.shape_cast %57 : vector<2x16x144xf32> to vector<32x144xf32>
    %c0_52 = arith.constant 0 : index
    %c0_53 = arith.constant 0 : index
    %c0_54 = arith.constant 0 : index
    %59 = vector.load %arg3[%c0_52, %c0_53, %c0_54] : memref<3x144x128xf32, #tpu.memory_space<vmem>>, vector<1x144x128xf32>
    %60 = vector.shape_cast %59 : vector<1x144x128xf32> to vector<144x128xf32>
    %cst_55 = arith.constant dense<0.000000e+00> : vector<32x128xf32>
    %61 = tpu.matmul %58, %60, %cst_55 {dimension_numbers = #tpu.dot_dimension_numbers<[1], [0], [0], [1], [0, 0, 1, 1], [], []>} : vector<32x144xf32>, vector<144x128xf32>, vector<32x128xf32> -> vector<32x128xf32>
    %62 = arith.addf %56, %61 : vector<32x128xf32>
    %c0_56 = arith.constant 0 : index
    %c1_57 = arith.constant 1 : index
    %c0_58 = arith.constant 0 : index
    %63 = vector.load %arg10[%c0_56, %c1_57, %c0_58] : memref<2x18x144xf32, #tpu.memory_space<vmem>>, vector<2x16x144xf32>
    %64 = vector.shape_cast %63 : vector<2x16x144xf32> to vector<32x144xf32>
    %c1_59 = arith.constant 1 : index
    %c0_60 = arith.constant 0 : index
    %c0_61 = arith.constant 0 : index
    %65 = vector.load %arg3[%c1_59, %c0_60, %c0_61] : memref<3x144x128xf32, #tpu.memory_space<vmem>>, vector<1x144x128xf32>
    %66 = vector.shape_cast %65 : vector<1x144x128xf32> to vector<144x128xf32>
    %cst_62 = arith.constant dense<0.000000e+00> : vector<32x128xf32>
    %67 = tpu.matmul %64, %66, %cst_62 {dimension_numbers = #tpu.dot_dimension_numbers<[1], [0], [0], [1], [0, 0, 1, 1], [], []>} : vector<32x144xf32>, vector<144x128xf32>, vector<32x128xf32> -> vector<32x128xf32>
    %68 = arith.addf %62, %67 : vector<32x128xf32>
    %c0_63 = arith.constant 0 : index
    %c2_64 = arith.constant 2 : index
    %c0_65 = arith.constant 0 : index
    %69 = vector.load %arg10[%c0_63, %c2_64, %c0_65] : memref<2x18x144xf32, #tpu.memory_space<vmem>>, vector<2x16x144xf32>
    %70 = vector.shape_cast %69 : vector<2x16x144xf32> to vector<32x144xf32>
    %c2_66 = arith.constant 2 : index
    %c0_67 = arith.constant 0 : index
    %c0_68 = arith.constant 0 : index
    %71 = vector.load %arg3[%c2_66, %c0_67, %c0_68] : memref<3x144x128xf32, #tpu.memory_space<vmem>>, vector<1x144x128xf32>
    %72 = vector.shape_cast %71 : vector<1x144x128xf32> to vector<144x128xf32>
    %cst_69 = arith.constant dense<0.000000e+00> : vector<32x128xf32>
    %73 = tpu.matmul %70, %72, %cst_69 {dimension_numbers = #tpu.dot_dimension_numbers<[1], [0], [0], [1], [0, 0, 1, 1], [], []>} : vector<32x144xf32>, vector<144x128xf32>, vector<32x128xf32> -> vector<32x128xf32>
    %74 = arith.addf %68, %73 : vector<32x128xf32>
    %c0_70 = arith.constant 0 : index
    %c0_71 = arith.constant 0 : index
    %75 = vector.load %arg8[%c0_70, %c0_71] : memref<128x128xf32, #tpu.memory_space<vmem>>, vector<128x128xf32>
    %cst_72 = arith.constant dense<0.000000e+00> : vector<32x128xf32>
    %76 = tpu.matmul %74, %75, %cst_72 {dimension_numbers = #tpu.dot_dimension_numbers<[1], [0], [0], [1], [0, 0, 1, 1], [], []>} : vector<32x128xf32>, vector<128x128xf32>, vector<32x128xf32> -> vector<32x128xf32>
    %cst_73 = arith.constant dense<0.000000e+00> : vector<128xf32>
    %77 = vector.multi_reduction <add>, %76, %cst_73 [0] : vector<32x128xf32> to vector<128xf32>
    %78 = vector.shape_cast %77 : vector<128xf32> to vector<1x128xf32>
    %79 = arith.mulf %74, %74 : vector<32x128xf32>
    %c0_74 = arith.constant 0 : index
    %c0_75 = arith.constant 0 : index
    %80 = vector.load %arg8[%c0_74, %c0_75] : memref<128x128xf32, #tpu.memory_space<vmem>>, vector<128x128xf32>
    %cst_76 = arith.constant dense<0.000000e+00> : vector<32x128xf32>
    %81 = tpu.matmul %79, %80, %cst_76 {dimension_numbers = #tpu.dot_dimension_numbers<[1], [0], [0], [1], [0, 0, 1, 1], [], []>} : vector<32x128xf32>, vector<128x128xf32>, vector<32x128xf32> -> vector<32x128xf32>
    %cst_77 = arith.constant dense<0.000000e+00> : vector<128xf32>
    %82 = vector.multi_reduction <add>, %81, %cst_77 [0] : vector<32x128xf32> to vector<128xf32>
    %83 = vector.shape_cast %82 : vector<128xf32> to vector<1x128xf32>
    %cst_78 = arith.constant 0.001953125 : f32
    %84 = vector.broadcast %cst_78 : f32 to vector<1x128xf32>
    %85 = arith.mulf %78, %84 : vector<1x128xf32>
    %cst_79 = arith.constant 0.001953125 : f32
    %86 = vector.broadcast %cst_79 : f32 to vector<1x128xf32>
    %87 = arith.mulf %83, %86 : vector<1x128xf32>
    %88 = arith.mulf %85, %85 : vector<1x128xf32>
    %89 = arith.subf %87, %88 : vector<1x128xf32>
    %c0_80 = arith.constant 0 : index
    %c0_81 = arith.constant 0 : index
    %90 = vector.load %arg6[%c0_80, %c0_81] : memref<1x128xf32, #tpu.memory_space<vmem>>, vector<1x128xf32>
    %cst_82 = arith.constant 9.99999974E-6 : f32
    %91 = vector.broadcast %cst_82 : f32 to vector<1x128xf32>
    %92 = arith.addf %89, %91 : vector<1x128xf32>
    %93 = math.rsqrt %92 : vector<1x128xf32>
    %94 = arith.mulf %90, %93 : vector<1x128xf32>
    %c0_83 = arith.constant 0 : index
    %c0_84 = arith.constant 0 : index
    %95 = vector.load %arg7[%c0_83, %c0_84] : memref<1x128xf32, #tpu.memory_space<vmem>>, vector<1x128xf32>
    %96 = arith.mulf %85, %94 : vector<1x128xf32>
    %97 = arith.subf %95, %96 : vector<1x128xf32>
    %98 = vector.broadcast %94 : vector<1x128xf32> to vector<32x128xf32>
    %99 = arith.mulf %74, %98 : vector<32x128xf32>
    %100 = vector.broadcast %97 : vector<1x128xf32> to vector<32x128xf32>
    %101 = arith.addf %99, %100 : vector<32x128xf32>
    %c0_85 = arith.constant 0 : index
    %c0_86 = arith.constant 0 : index
    %102 = vector.load %arg1[%c0_85, %c0_86] : memref<32x128xf32, #tpu.memory_space<vmem>>, vector<32x128xf32>
    %103 = arith.addf %101, %102 : vector<32x128xf32>
    %cst_87 = arith.constant 0.000000e+00 : f32
    %104 = vector.broadcast %cst_87 : f32 to vector<32x128xf32>
    %105 = arith.maximumf %103, %104 : vector<32x128xf32>
    %c0_88 = arith.constant 0 : index
    %c0_89 = arith.constant 0 : index
    %106 = vector.load %arg9[%c0_88, %c0_89] : memref<32x128xf32, #tpu.memory_space<vmem>>, vector<32x128xf32>
    tpu.vector_store %arg9[%c0_88, %c0_89], %105 {strides = array<i32>} : memref<32x128xf32, #tpu.memory_space<vmem>>, vector<32x128xf32>,
    return
  }
}

</mosaic_0001>

<llo_original>
// kernel: tpu_custom_call.1
$region0: #{tpu_custom_call.1}
  #allocation0 [shape = 'u32[]', space=smem, size = 0x4, offset = 0x4, fixed_abs, tag = 'smem constant byte address 0x4 - core index']
  #allocation1 [shape = 'u32[144,128]{1,0:T(1,128)}', space=vmem, size = 0x12000, scoped, tag = 'internal scratch']
  #allocation2 [shape = 'f32[2,18,144]{2,1,0:T(8,128)}', space=vmem, size = 0xc000, scoped, tag = 'scratch operand']
  %s0 = inlined_call_operand.vmem [shape: f32[2,18,144], index: 0, kind: input, shape index: {}]
  %s1 = inlined_call_operand.vmem [shape: f32[32,128], index: 1, kind: input, shape index: {}]
  %s2 = inlined_call_operand.hbm [shape: f32[3,144,128], index: 2, kind: input, shape index: {}]
  %s3 = inlined_call_operand.hbm [shape: f32[3,144,128], index: 3, kind: input, shape index: {}]
  %s4 = inlined_call_operand.vmem [shape: f32[1,128], index: 4, kind: input, shape index: {}]
  %s5 = inlined_call_operand.vmem [shape: f32[1,128], index: 5, kind: input, shape index: {}]
  %s6 = inlined_call_operand.vmem [shape: f32[1,128], index: 6, kind: input, shape index: {}]
  %s7 = inlined_call_operand.vmem [shape: f32[1,128], index: 7, kind: input, shape index: {}]
  %s8 = inlined_call_operand.vmem [shape: f32[128,128], index: 8, kind: input, shape index: {}]
  %s9 = inlined_call_operand.hbm [shape: f32[32,128], index: 9, kind: output, shape index: {}]
  %s10 = sld [smem:[#allocation0]]
  $region54: #{tpu_custom_call.1} parent=0
    _
  %s12 = ssub.s32 1, %s10
  %s13 = scalar_select 0, %s12, %s10
  $region1: #{tpu_custom_call.1} parent=0
    #allocation3 [shape = 'u8[221184]{0}', space=vmem, size = 0x36000, scoped, tag = 'input window, operand 2, single buffered']
    #allocation4 [shape = 's32[1]{0}', space=sflag, size = 0x4, scoped, tag = 'scoped memory for tpu_custom_call.1']
    #allocation5 [shape = 's32[1]{0}', space=sflag, size = 0x4, scoped, tag = 'scoped memory for tpu_custom_call.1']
    #allocation6 [shape = 'u8[221184]{0}', space=vmem, size = 0x36000, scoped, tag = 'input window, operand 3, single buffered']
    #allocation7 [shape = 's32[1]{0}', space=sflag, size = 0x4, scoped, tag = 'scoped memory for tpu_custom_call.1']
    #allocation8 [shape = 'u8[16384]{0}', space=vmem, size = 0x4000, scoped, tag = 'output window, operand 0, single buffered']
    %14 = vsyncpa [#allocation4], 0
    %15 = vsyncpa [#allocation7], 0
    %16 = vsyncpa [#allocation5], 0
    // Predicated region
    $region2: #{tpu_custom_call.1} parent=1 // pred_check
      _
    $region3: #{tpu_custom_call.1} parent=1 // pred_check_branch
      %18 = sbr.rel (0) target = $region5
    $region4: #{tpu_custom_call.1} parent=1 // pred_region
      _
    $region5: #{tpu_custom_call.1} parent=1 // pred_fallthru
      _
    // Predicated region
    $region6: #{tpu_custom_call.1} parent=1 // pred_check
      _
    $region7: #{tpu_custom_call.1} parent=1 // pred_check_branch
      %20 = sbr.rel (0) target = $region9
    $region8: #{tpu_custom_call.1} parent=1 // pred_region
      _
    $region9: #{tpu_custom_call.1} parent=1 // pred_fallthru
      _
    // Predicated region
    $region10: #{tpu_custom_call.1} parent=1 // pred_check
      _
    $region11: #{tpu_custom_call.1} parent=1 // pred_check_branch
      %22 = sbr.rel (0) target = $region13
    $region12: #{tpu_custom_call.1} parent=1 // pred_region
      %s24 = ssub.s32 6912, 6912
      %25 = vsyncadd [#allocation4], %s24
      %s26 = sshll.u32 [#allocation3], 4
      %s27 = int_to_ptr.vmem [resolvable:$true] %s26
      %32 = dma.hbm_to_vmem [thread:$0]  %s2, 6912, %s27, [#allocation4], 128, 128, 8
    $region13: #{tpu_custom_call.1} parent=1 // pred_fallthru
      _
    // Predicated region
    $region14: #{tpu_custom_call.1} parent=1 // pred_check
      _
    $region15: #{tpu_custom_call.1} parent=1 // pred_check_branch
      %34 = sbr.rel (0) target = $region17
    $region16: #{tpu_custom_call.1} parent=1 // pred_region
      %s36 = ssub.s32 6912, 6912
      %37 = vsyncadd [#allocation7], %s36
      %s38 = sshll.u32 [#allocation6], 4
      %s39 = int_to_ptr.vmem [resolvable:$true] %s38
      %44 = dma.hbm_to_vmem [thread:$0]  %s3, 6912, %s39, [#allocation7], 128, 128, 8
    $region17: #{tpu_custom_call.1} parent=1 // pred_fallthru
      _
    // Predicated region
    $region18: #{tpu_custom_call.1} parent=1 // pred_check
      _
    $region19: #{tpu_custom_call.1} parent=1 // pred_check_branch
      %46 = sbr.rel (0) target = $region21
    $region20: #{tpu_custom_call.1} parent=1 // pred_region
      _
    $region21: #{tpu_custom_call.1} parent=1 // pred_fallthru
      _
    // Predicated region
    $region22: #{tpu_custom_call.1} parent=1 // pred_check
      _
    $region23: #{tpu_custom_call.1} parent=1 // pred_check_branch
      %48 = sbr.rel (0) target = $region25
    $region24: #{tpu_custom_call.1} parent=1 // pred_region
      _
    $region25: #{tpu_custom_call.1} parent=1 // pred_fallthru
      _
    // Predicated region
    $region26: #{tpu_custom_call.1} parent=1 // pred_check
      _
    $region27: #{tpu_custom_call.1} parent=1 // pred_check_branch
      %50 = sbr.rel (0) target = $region29
    $region28: #{tpu_custom_call.1} parent=1 // pred_region
      _
    $region29: #{tpu_custom_call.1} parent=1 // pred_fallthru
      _
    // Predicated region
    $region30: #{tpu_custom_call.1} parent=1 // pred_check
      _
    $region31: #{tpu_custom_call.1} parent=1 // pred_check_branch
      %52 = sbr.rel (0) target = $region33
    $region32: #{tpu_custom_call.1} parent=1 // pred_region
      _
    $region33: #{tpu_custom_call.1} parent=1 // pred_fallthru
      _
    // Predicated region
    $region34: #{tpu_custom_call.1} parent=1 // pred_check
      _
    $region35: #{tpu_custom_call.1} parent=1 // pred_check_branch
      %54 = sbr.rel (0) target = $region37
    $region36: #{tpu_custom_call.1} parent=1 // pred_region
      _
    $region37: #{tpu_custom_call.1} parent=1 // pred_fallthru
      _
    // Predicated region
    $region38: #{tpu_custom_call.1} parent=1 // pred_check
      _
    $region39: #{tpu_custom_call.1} parent=1 // pred_check_branch
      %56 = sbr.rel (0) target = $region41
    $region40: #{tpu_custom_call.1} parent=1 // pred_region
      %57 = dma.done [#allocation4], 6912
    $region41: #{tpu_custom_call.1} parent=1 // pred_fallthru
      _
    // Predicated region
    $region42: #{tpu_custom_call.1} parent=1 // pred_check
      _
    $region43: #{tpu_custom_call.1} parent=1 // pred_check_branch
      %59 = sbr.rel (0) target = $region45
    $region44: #{tpu_custom_call.1} parent=1 // pred_region
      %60 = dma.done [#allocation7], 6912
    $region45: #{tpu_custom_call.1} parent=1 // pred_fallthru
      _
    %v61 = vld [vmem:[%s0] sm:$0xff]
    %v62 = vld [vmem:[%s0 + $0x8] sm:$0xff]
    %v63 = vld [vmem:[%s0 + $0x10] sm:$0xff]
    %v64 = vld [vmem:[%s0 + $0x18] sm:$0xff]
    %v65 = vld [vmem:[%s0 + $0x30] sm:$0xff]
    %v66 = vld [vmem:[%s0 + $0x38] sm:$0xff]
    %v67 = vld [vmem:[%s0 + $0x40] sm:$0xff]
    %v68 = vld [vmem:[%s0 + $0x48] sm:$0xff]
    %v69 = vld [vmem:[#allocation3] sm:$0xff]
    %v70 = vld [vmem:[#allocation3 + $0x8] sm:$0xff]
    %v71 = vld [vmem:[#allocation3 + $0x10] sm:$0xff]
    %v72 = vld [vmem:[#allocation3 + $0x18] sm:$0xff]
    %v73 = vld [vmem:[#allocation3 + $0x20] sm:$0xff]
    %v74 = vld [vmem:[#allocation3 + $0x28] sm:$0xff]
    %v75 = vld [vmem:[#allocation3 + $0x30] sm:$0xff]
    %v76 = vld [vmem:[#allocation3 + $0x38] sm:$0xff]
    %v77 = vld [vmem:[#allocation3 + $0x40] sm:$0xff]
    %v78 = vld [vmem:[#allocation3 + $0x48] sm:$0xff]
    %v79 = vld [vmem:[#allocation3 + $0x50] sm:$0xff]
    %v80 = vld [vmem:[#allocation3 + $0x58] sm:$0xff]
    %v81 = vld [vmem:[#allocation3 + $0x60] sm:$0xff]
    %v82 = vld [vmem:[#allocation3 + $0x68] sm:$0xff]
    %v83 = vld [vmem:[#allocation3 + $0x70] sm:$0xff]
    %v84 = vld [vmem:[#allocation3 + $0x78] sm:$0xff]
    %v85 = vld [vmem:[#allocation3 + $0x80] sm:$0xff]
    %v86 = vld [vmem:[#allocation3 + $0x88] sm:$0xff]
    %v87 = vld [vmem:[%s0] sm:$0xfe]
    %v88 = vld [vmem:[%s0 + $0x8] sm:$0xfe]
    %v89 = vld [vmem:[%s0 + $0x20] sm:$0x1]
    %v90 = vld [vmem:[%s0 + $0x28] sm:$0x1]
    %v91 = vld [vmem:[%s0 + $0x30] sm:$0xfe]
    %v92 = vld [vmem:[%s0 + $0x38] sm:$0xfe]
    %v93 = vld [vmem:[%s0 + $0x50] sm:$0x1]
    %v94 = vld [vmem:[%s0 + $0x58] sm:$0x1]
    %vm107 = vcmask 1046528
    %v108 = vrot.slane %v87, 1
    %v109 = vrot.slane %v63, 1
    %v110 = vsel %vm107, %v108, %v109
    %v111 = vrot.slane %v88, 1
    %v112 = vrot.slane %v64, 1
    %v113 = vsel %vm107, %v111, %v112
    %v114 = vrot.slane %v89, 1
    %v115 = vsel %vm107, %v109, %v114
    %v116 = vrot.slane %v90, 1
    %v117 = vsel %vm107, %v112, %v116
    %v118 = vrot.slane %v91, 1
    %v119 = vrot.slane %v67, 1
    %v120 = vsel %vm107, %v118, %v119
    %v121 = vrot.slane %v92, 1
    %v122 = vrot.slane %v68, 1
    %v123 = vsel %vm107, %v121, %v122
    %v124 = vrot.slane %v93, 1
    %v125 = vsel %vm107, %v119, %v124
    %v126 = vrot.slane %v94, 1
    %v127 = vsel %vm107, %v122, %v126
    %s132 = scalar_lea.vmem [#allocation3], 144
    %v133 = vld [vmem:[%s132] sm:$0xff]
    %v134 = vld [vmem:[%s132 + $0x8] sm:$0xff]
    %v135 = vld [vmem:[%s132 + $0x10] sm:$0xff]
    %v136 = vld [vmem:[%s132 + $0x18] sm:$0xff]
    %v137 = vld [vmem:[%s132 + $0x20] sm:$0xff]
    %v138 = vld [vmem:[%s132 + $0x28] sm:$0xff]
    %v139 = vld [vmem:[%s132 + $0x30] sm:$0xff]
    %v140 = vld [vmem:[%s132 + $0x38] sm:$0xff]
    %v141 = vld [vmem:[%s132 + $0x40] sm:$0xff]
    %v142 = vld [vmem:[%s132 + $0x48] sm:$0xff]
    %v143 = vld [vmem:[%s132 + $0x50] sm:$0xff]
    %v144 = vld [vmem:[%s132 + $0x58] sm:$0xff]
    %v145 = vld [vmem:[%s132 + $0x60] sm:$0xff]
    %v146 = vld [vmem:[%s132 + $0x68] sm:$0xff]
    %v147 = vld [vmem:[%s132 + $0x70] sm:$0xff]
    %v148 = vld [vmem:[%s132 + $0x78] sm:$0xff]
    %v149 = vld [vmem:[%s132 + $0x80] sm:$0xff]
    %v150 = vld [vmem:[%s132 + $0x88] sm:$0xff]
    %vm151 = vcmask 130048
    %v152 = vsel %vm151, %v113, 0
    %v154 = vsel %vm151, %v117, 0
    %v156 = vsel %vm151, %v123, 0
    %v158 = vsel %vm151, %v127, 0
    %160 = vmatprep.subr.mxu0 0.0
    %161 = vmatpush1.msra.mxu0 %v148
    %162 = vmatprep.subr.mxu0 0.0
    %163 = vmatpush1.msra.mxu0 %v147
    %164 = vmatprep.subr.mxu0 0.0
    %165 = vmatpush1.msra.mxu0 %v146
    %166 = vmatprep.subr.mxu0 0.0
    %167 = vmatpush1.msra.mxu0 %v145
    %168 = vmatprep.subr.mxu0 0.0
    %169 = vmatpush1.msra.mxu0 %v144
    %170 = vmatprep.subr.mxu0 0.0
    %171 = vmatpush1.msra.mxu0 %v143
    %172 = vmatprep.subr.mxu0 0.0
    %173 = vmatpush1.msra.mxu0 %v142
    %174 = vmatprep.subr.mxu0 0.0
    %175 = vmatpush1.msra.mxu0 %v141
    %176 = vmatprep.subr.mxu0 0.0
    %177 = vmatpush1.msra.mxu0 %v140
    %178 = vmatprep.subr.mxu0 0.0
    %179 = vmatpush1.msra.mxu0 %v139
    %180 = vmatprep.subr.mxu0 0.0
    %181 = vmatpush1.msra.mxu0 %v138
    %182 = vmatprep.subr.mxu0 0.0
    %183 = vmatpush1.msra.mxu0 %v137
    %184 = vmatprep.subr.mxu0 0.0
    %185 = vmatpush1.msra.mxu0 %v136
    %186 = vmatprep.subr.mxu0 0.0
    %187 = vmatpush1.msra.mxu0 %v135
    %188 = vmatprep.subr.mxu0 0.0
    %189 = vmatpush1.msra.mxu0 %v134
    %190 = vmatprep.subr.mxu0 0.0
    %191 = vmatpush1.msra.mxu0 %v133
    %192 = vmatprep.subr.mxu0 0.0
    %193 = vmatpush2.msra.mxu0 0.0
    %194 = vmatprep.subr.mxu0 0.0
    %195 = vmatpush2.msra.mxu0 0.0
    %196 = vmatprep.subr.mxu0 0.0
    %197 = vmatpush2.msra.mxu0 0.0
    %198 = vmatprep.subr.mxu0 0.0
    %199 = vmatpush2.msra.mxu0 0.0
    %200 = vmatprep.subr.mxu0 0.0
    %201 = vmatpush2.msra.mxu0 0.0
    %202 = vmatprep.subr.mxu0 0.0
    %203 = vmatpush2.msra.mxu0 0.0
    %204 = vmatprep.subr.mxu0 0.0
    %205 = vmatpush2.msra.mxu0 0.0
    %206 = vmatprep.subr.mxu0 0.0
    %207 = vmatpush2.msra.mxu0 0.0
    %208 = vmatprep.subr.mxu0 0.0
    %209 = vmatpush2.msra.mxu0 0.0
    %210 = vmatprep.subr.mxu0 0.0
    %211 = vmatpush2.msra.mxu0 0.0
    %212 = vmatprep.subr.mxu0 0.0
    %213 = vmatpush2.msra.mxu0 0.0
    %214 = vmatprep.subr.mxu0 0.0
    %215 = vmatpush2.msra.mxu0 0.0
    %216 = vmatprep.subr.mxu0 0.0
    %217 = vmatpush2.msra.mxu0 0.0
    %218 = vmatprep.subr.mxu0 0.0
    %219 = vmatpush2.msra.mxu0 0.0
    %220 = vmatprep.subr.mxu0 0.0
    %221 = vmatpush2.msra.mxu0 %v150
    %222 = vmatprep.subr.mxu0 0.0
    %223 = vmatpush2.msra.mxu0 %v149
    %224 = vmatprep.mubr.f32.mxu0 %v152
    %225 = vmatmul.mubr.f32.gmra.mxu0 %v110
    %v226 = vpop.f32.mrf.mxu0
    %v227 = vadd.f32 0.0, %v226
    %v228 = vpop.f32.mrf.mxu0
    %229 = vmatprep.mubr.f32.mxu0 %v154
    %230 = vmatmul.mubr.f32.gmra.mxu0 %v115
    %v231 = vpop.f32.mrf.mxu0
    %v232 = vadd.f32 0.0, %v231
    %v233 = vpop.f32.mrf.mxu0
    %234 = vmatprep.mubr.f32.mxu0 %v156
    %235 = vmatmul.mubr.f32.gmra.mxu0 %v120
    %v236 = vpop.f32.mrf.mxu0
    %v237 = vadd.f32 0.0, %v236
    %v238 = vpop.f32.mrf.mxu0
    %239 = vmatprep.mubr.f32.mxu0 %v158
    %240 = vmatmul.mubr.f32.gmra.mxu0 %v125
    %v241 = vpop.f32.mrf.mxu0
    %v242 = vadd.f32 0.0, %v241
    %v243 = vpop.f32.mrf.mxu0
    %244 = vdwg.mxu0
    %v246 = vsel %vm151, %v62, 0
    %v248 = vsel %vm151, %v64, 0
    %v251 = vsel %vm151, %v66, 0
    %v253 = vsel %vm151, %v68, 0
    %255 = vmatprep.subr.mxu0 0.0
    %256 = vmatpush1.msra.mxu0 %v84
    %257 = vmatprep.subr.mxu0 0.0
    %258 = vmatpush1.msra.mxu0 %v83
    %259 = vmatprep.subr.mxu0 0.0
    %260 = vmatpush1.msra.mxu0 %v82
    %261 = vmatprep.subr.mxu0 0.0
    %262 = vmatpush1.msra.mxu0 %v81
    %263 = vmatprep.subr.mxu0 0.0
    %264 = vmatpush1.msra.mxu0 %v80
    %265 = vmatprep.subr.mxu0 0.0
    %266 = vmatpush1.msra.mxu0 %v79
    %267 = vmatprep.subr.mxu0 0.0
    %268 = vmatpush1.msra.mxu0 %v78
    %269 = vmatprep.subr.mxu0 0.0
    %270 = vmatpush1.msra.mxu0 %v77
    %271 = vmatprep.subr.mxu0 0.0
    %272 = vmatpush1.msra.mxu0 %v76
    %273 = vmatprep.subr.mxu0 0.0
    %274 = vmatpush1.msra.mxu0 %v75
    %275 = vmatprep.subr.mxu0 0.0
    %276 = vmatpush1.msra.mxu0 %v74
    %277 = vmatprep.subr.mxu0 0.0
    %278 = vmatpush1.msra.mxu0 %v73
    %279 = vmatprep.subr.mxu0 0.0
    %280 = vmatpush1.msra.mxu0 %v72
    %281 = vmatprep.subr.mxu0 0.0
    %282 = vmatpush1.msra.mxu0 %v71
    %283 = vmatprep.subr.mxu0 0.0
    %284 = vmatpush1.msra.mxu0 %v70
    %285 = vmatprep.subr.mxu0 0.0
    %286 = vmatpush1.msra.mxu0 %v69
    %287 = vmatprep.subr.mxu0 0.0
    %288 = vmatpush2.msra.mxu0 0.0
    %289 = vmatprep.subr.mxu0 0.0
    %290 = vmatpush2.msra.mxu0 0.0
    %291 = vmatprep.subr.mxu0 0.0
    %292 = vmatpush2.msra.mxu0 0.0
    %293 = vmatprep.subr.mxu0 0.0
    %294 = vmatpush2.msra.mxu0 0.0
    %295 = vmatprep.subr.mxu0 0.0
    %296 = vmatpush2.msra.mxu0 0.0
    %297 = vmatprep.subr.mxu0 0.0
    %298 = vmatpush2.msra.mxu0 0.0
    %299 = vmatprep.subr.mxu0 0.0
    %300 = vmatpush2.msra.mxu0 0.0
    %301 = vmatprep.subr.mxu0 0.0
    %302 = vmatpush2.msra.mxu0 0.0
    %303 = vmatprep.subr.mxu0 0.0
    %304 = vmatpush2.msra.mxu0 0.0
    %305 = vmatprep.subr.mxu0 0.0
    %306 = vmatpush2.msra.mxu0 0.0
    %307 = vmatprep.subr.mxu0 0.0
    %308 = vmatpush2.msra.mxu0 0.0
    %309 = vmatprep.subr.mxu0 0.0
    %310 = vmatpush2.msra.mxu0 0.0
    %311 = vmatprep.subr.mxu0 0.0
    %312 = vmatpush2.msra.mxu0 0.0
    %313 = vmatprep.subr.mxu0 0.0
    %314 = vmatpush2.msra.mxu0 0.0
    %315 = vmatprep.subr.mxu0 0.0
    %316 = vmatpush2.msra.mxu0 %v86
    %317 = vmatprep.subr.mxu0 0.0
    %318 = vmatpush2.msra.mxu0 %v85
    %319 = vmatprep.mubr.f32.mxu0 %v246
    %320 = vmatmul.mubr.f32.gmra.mxu0 %v61
    %v321 = vpop.f32.mrf.mxu0
    %v322 = vadd.f32 %v227, %v321
    %v323 = vpop.f32.mrf.mxu0
    %324 = vmatprep.mubr.f32.mxu0 %v248
    %325 = vmatmul.mubr.f32.gmra.mxu0 %v63
    %v326 = vpop.f32.mrf.mxu0
    %v327 = vadd.f32 %v232, %v326
    %v328 = vpop.f32.mrf.mxu0
    %329 = vmatprep.mubr.f32.mxu0 %v251
    %330 = vmatmul.mubr.f32.gmra.mxu0 %v65
    %v331 = vpop.f32.mrf.mxu0
    %v332 = vadd.f32 %v237, %v331
    %v333 = vpop.f32.mrf.mxu0
    %334 = vmatprep.mubr.f32.mxu0 %v253
    %335 = vmatmul.mubr.f32.gmra.mxu0 %v67
    %v336 = vpop.f32.mrf.mxu0
    %v337 = vadd.f32 %v242, %v336
    %v338 = vpop.f32.mrf.mxu0
    %339 = vdwg.mxu0
    %v340 = vld [vmem:[%s0] sm:$0xfc]
    %v341 = vld [vmem:[%s0 + $0x8] sm:$0xfc]
    %v342 = vld [vmem:[%s0 + $0x20] sm:$0x3]
    %v343 = vld [vmem:[%s0 + $0x28] sm:$0x3]
    %v344 = vld [vmem:[%s0 + $0x30] sm:$0xfc]
    %v345 = vld [vmem:[%s0 + $0x38] sm:$0xfc]
    %v346 = vld [vmem:[%s0 + $0x50] sm:$0x3]
    %v347 = vld [vmem:[%s0 + $0x58] sm:$0x3]
    %vm356 = vcmask 1045504
    %v357 = vrot.slane %v340, 2
    %v358 = vrot.slane %v63, 2
    %v359 = vsel %vm356, %v357, %v358
    %v360 = vrot.slane %v341, 2
    %v361 = vrot.slane %v64, 2
    %v362 = vsel %vm356, %v360, %v361
    %v363 = vrot.slane %v342, 2
    %v364 = vsel %vm356, %v358, %v363
    %v365 = vrot.slane %v343, 2
    %v366 = vsel %vm356, %v361, %v365
    %v367 = vrot.slane %v344, 2
    %v368 = vrot.slane %v67, 2
    %v369 = vsel %vm356, %v367, %v368
    %v370 = vrot.slane %v345, 2
    %v371 = vrot.slane %v68, 2
    %v372 = vsel %vm356, %v370, %v371
    %v373 = vrot.slane %v346, 2
    %v374 = vsel %vm356, %v368, %v373
    %v375 = vrot.slane %v347, 2
    %v376 = vsel %vm356, %v371, %v375
    %s381 = scalar_lea.vmem [#allocation3], 288
    %v382 = vld [vmem:[%s381] sm:$0xff]
    %v383 = vld [vmem:[%s381 + $0x8] sm:$0xff]
    %v384 = vld [vmem:[%s381 + $0x10] sm:$0xff]
    %v385 = vld [vmem:[%s381 + $0x18] sm:$0xff]
    %v386 = vld [vmem:[%s381 + $0x20] sm:$0xff]
    %v387 = vld [vmem:[%s381 + $0x28] sm:$0xff]
    %v388 = vld [vmem:[%s381 + $0x30] sm:$0xff]
    %v389 = vld [vmem:[%s381 + $0x38] sm:$0xff]
    %v390 = vld [vmem:[%s381 + $0x40] sm:$0xff]
    %v391 = vld [vmem:[%s381 + $0x48] sm:$0xff]
    %v392 = vld [vmem:[%s381 + $0x50] sm:$0xff]
    %v393 = vld [vmem:[%s381 + $0x58] sm:$0xff]
    %v394 = vld [vmem:[%s381 + $0x60] sm:$0xff]
    %v395 = vld [vmem:[%s381 + $0x68] sm:$0xff]
    %v396 = vld [vmem:[%s381 + $0x70] sm:$0xff]
    %v397 = vld [vmem:[%s381 + $0x78] sm:$0xff]
    %v398 = vld [vmem:[%s381 + $0x80] sm:$0xff]
    %v399 = vld [vmem:[%s381 + $0x88] sm:$0xff]
    %v400 = vsel %vm151, %v362, 0
    %v402 = vsel %vm151, %v366, 0
    %v404 = vsel %vm151, %v372, 0
    %v406 = vsel %vm151, %v376, 0
    %408 = vmatprep.subr.mxu0 0.0
    %409 = vmatpush1.msra.mxu0 %v397
    %410 = vmatprep.subr.mxu0 0.0
    %411 = vmatpush1.msra.mxu0 %v396
    %412 = vmatprep.subr.mxu0 0.0
    %413 = vmatpush1.msra.mxu0 %v395
    %414 = vmatprep.subr.mxu0 0.0
    %415 = vmatpush1.msra.mxu0 %v394
    %416 = vmatprep.subr.mxu0 0.0
    %417 = vmatpush1.msra.mxu0 %v393
    %418 = vmatprep.subr.mxu0 0.0
    %419 = vmatpush1.msra.mxu0 %v392
    %420 = vmatprep.subr.mxu0 0.0
    %421 = vmatpush1.msra.mxu0 %v391
    %422 = vmatprep.subr.mxu0 0.0
    %423 = vmatpush1.msra.mxu0 %v390
    %424 = vmatprep.subr.mxu0 0.0
    %425 = vmatpush1.msra.mxu0 %v389
    %426 = vmatprep.subr.mxu0 0.0
    %427 = vmatpush1.msra.mxu0 %v388
    %428 = vmatprep.subr.mxu0 0.0
    %429 = vmatpush1.msra.mxu0 %v387
    %430 = vmatprep.subr.mxu0 0.0
    %431 = vmatpush1.msra.mxu0 %v386
    %432 = vmatprep.subr.mxu0 0.0
    %433 = vmatpush1.msra.mxu0 %v385
    %434 = vmatprep.subr.mxu0 0.0
    %435 = vmatpush1.msra.mxu0 %v384
    %436 = vmatprep.subr.mxu0 0.0
    %437 = vmatpush1.msra.mxu0 %v383
    %438 = vmatprep.subr.mxu0 0.0
    %439 = vmatpush1.msra.mxu0 %v382
    %440 = vmatprep.subr.mxu0 0.0
    %441 = vmatpush2.msra.mxu0 0.0
    %442 = vmatprep.subr.mxu0 0.0
    %443 = vmatpush2.msra.mxu0 0.0
    %444 = vmatprep.subr.mxu0 0.0
    %445 = vmatpush2.msra.mxu0 0.0
    %446 = vmatprep.subr.mxu0 0.0
    %447 = vmatpush2.msra.mxu0 0.0
    %448 = vmatprep.subr.mxu0 0.0
    %449 = vmatpush2.msra.mxu0 0.0
    %450 = vmatprep.subr.mxu0 0.0
    %451 = vmatpush2.msra.mxu0 0.0
    %452 = vmatprep.subr.mxu0 0.0
    %453 = vmatpush2.msra.mxu0 0.0
    %454 = vmatprep.subr.mxu0 0.0
    %455 = vmatpush2.msra.mxu0 0.0
    %456 = vmatprep.subr.mxu0 0.0
    %457 = vmatpush2.msra.mxu0 0.0
    %458 = vmatprep.subr.mxu0 0.0
    %459 = vmatpush2.msra.mxu0 0.0
    %460 = vmatprep.subr.mxu0 0.0
    %461 = vmatpush2.msra.mxu0 0.0
    %462 = vmatprep.subr.mxu0 0.0
    %463 = vmatpush2.msra.mxu0 0.0
    %464 = vmatprep.subr.mxu0 0.0
    %465 = vmatpush2.msra.mxu0 0.0
    %466 = vmatprep.subr.mxu0 0.0
    %467 = vmatpush2.msra.mxu0 0.0
    %468 = vmatprep.subr.mxu0 0.0
    %469 = vmatpush2.msra.mxu0 %v399
    %470 = vmatprep.subr.mxu0 0.0
    %471 = vmatpush2.msra.mxu0 %v398
    %472 = vmatprep.mubr.f32.mxu0 %v400
    %473 = vmatmul.mubr.f32.gmra.mxu0 %v359
    %v474 = vpop.f32.mrf.mxu0
    %v475 = vadd.f32 0.0, %v474
    %v476 = vpop.f32.mrf.mxu0
    %477 = vmatprep.mubr.f32.mxu0 %v402
    %478 = vmatmul.mubr.f32.gmra.mxu0 %v364
    %v479 = vpop.f32.mrf.mxu0
    %v480 = vadd.f32 0.0, %v479
    %v481 = vpop.f32.mrf.mxu0
    %482 = vmatprep.mubr.f32.mxu0 %v404
    %483 = vmatmul.mubr.f32.gmra.mxu0 %v369
    %v484 = vpop.f32.mrf.mxu0
    %v485 = vadd.f32 0.0, %v484
    %v486 = vpop.f32.mrf.mxu0
    %487 = vmatprep.mubr.f32.mxu0 %v406
    %488 = vmatmul.mubr.f32.gmra.mxu0 %v374
    %v489 = vpop.f32.mrf.mxu0
    %v490 = vadd.f32 0.0, %v489
    %v491 = vpop.f32.mrf.mxu0
    %492 = vdwg.mxu0
    %v493 = vadd.f32 %v322, %v475
    %v494 = vadd.f32 %v327, %v480
    %v495 = vadd.f32 %v332, %v485
    %v496 = vadd.f32 %v337, %v490
    %v497 = vld [vmem:[%s8] sm:$0xff]
    %v498 = vld [vmem:[%s8 + $0x8] sm:$0xff]
    %v499 = vld [vmem:[%s8 + $0x10] sm:$0xff]
    %v500 = vld [vmem:[%s8 + $0x18] sm:$0xff]
    %v501 = vld [vmem:[%s8 + $0x20] sm:$0xff]
    %v502 = vld [vmem:[%s8 + $0x28] sm:$0xff]
    %v503 = vld [vmem:[%s8 + $0x30] sm:$0xff]
    %v504 = vld [vmem:[%s8 + $0x38] sm:$0xff]
    %v505 = vld [vmem:[%s8 + $0x40] sm:$0xff]
    %v506 = vld [vmem:[%s8 + $0x48] sm:$0xff]
    %v507 = vld [vmem:[%s8 + $0x50] sm:$0xff]
    %v508 = vld [vmem:[%s8 + $0x58] sm:$0xff]
    %v509 = vld [vmem:[%s8 + $0x60] sm:$0xff]
    %v510 = vld [vmem:[%s8 + $0x68] sm:$0xff]
    %v511 = vld [vmem:[%s8 + $0x70] sm:$0xff]
    %v512 = vld [vmem:[%s8 + $0x78] sm:$0xff]
    %513 = vmatprep.subr.mxu0 0.0
    %514 = vmatpush1.msra.mxu0 %v512
    %515 = vmatprep.subr.mxu0 0.0
    %516 = vmatpush1.msra.mxu0 %v511
    %517 = vmatprep.subr.mxu0 0.0
    %518 = vmatpush1.msra.mxu0 %v510
    %519 = vmatprep.subr.mxu0 0.0
    %520 = vmatpush1.msra.mxu0 %v509
    %521 = vmatprep.subr.mxu0 0.0
    %522 = vmatpush1.msra.mxu0 %v508
    %523 = vmatprep.subr.mxu0 0.0
    %524 = vmatpush1.msra.mxu0 %v507
    %525 = vmatprep.subr.mxu0 0.0
    %526 = vmatpush1.msra.mxu0 %v506
    %527 = vmatprep.subr.mxu0 0.0
    %528 = vmatpush1.msra.mxu0 %v505
    %529 = vmatprep.subr.mxu0 0.0
    %530 = vmatpush1.msra.mxu0 %v504
    %531 = vmatprep.subr.mxu0 0.0
    %532 = vmatpush1.msra.mxu0 %v503
    %533 = vmatprep.subr.mxu0 0.0
    %534 = vmatpush1.msra.mxu0 %v502
    %535 = vmatprep.subr.mxu0 0.0
    %536 = vmatpush1.msra.mxu0 %v501
    %537 = vmatprep.subr.mxu0 0.0
    %538 = vmatpush1.msra.mxu0 %v500
    %539 = vmatprep.subr.mxu0 0.0
    %540 = vmatpush1.msra.mxu0 %v499
    %541 = vmatprep.subr.mxu0 0.0
    %542 = vmatpush1.msra.mxu0 %v498
    %543 = vmatprep.subr.mxu0 0.0
    %544 = vmatpush1.msra.mxu0 %v497
    %545 = vmatprep.subr.mxu0 0.0
    %546 = vmatpush2.msra.mxu0 0.0
    %547 = vmatprep.subr.mxu0 0.0
    %548 = vmatpush2.msra.mxu0 0.0
    %549 = vmatprep.subr.mxu0 0.0
    %550 = vmatpush2.msra.mxu0 0.0
    %551 = vmatprep.subr.mxu0 0.0
    %552 = vmatpush2.msra.mxu0 0.0
    %553 = vmatprep.subr.mxu0 0.0
    %554 = vmatpush2.msra.mxu0 0.0
    %555 = vmatprep.subr.mxu0 0.0
    %556 = vmatpush2.msra.mxu0 0.0
    %557 = vmatprep.subr.mxu0 0.0
    %558 = vmatpush2.msra.mxu0 0.0
    %559 = vmatprep.subr.mxu0 0.0
    %560 = vmatpush2.msra.mxu0 0.0
    %561 = vmatprep.subr.mxu0 0.0
    %562 = vmatpush2.msra.mxu0 0.0
    %563 = vmatprep.subr.mxu0 0.0
    %564 = vmatpush2.msra.mxu0 0.0
    %565 = vmatprep.subr.mxu0 0.0
    %566 = vmatpush2.msra.mxu0 0.0
    %567 = vmatprep.subr.mxu0 0.0
    %568 = vmatpush2.msra.mxu0 0.0
    %569 = vmatprep.subr.mxu0 0.0
    %570 = vmatpush2.msra.mxu0 0.0
    %571 = vmatprep.subr.mxu0 0.0
    %572 = vmatpush2.msra.mxu0 0.0
    %573 = vmatprep.subr.mxu0 0.0
    %574 = vmatpush2.msra.mxu0 0.0
    %575 = vmatprep.subr.mxu0 0.0
    %576 = vmatpush2.msra.mxu0 0.0
    %577 = vmatprep.mubr.f32.mxu0 0.0
    %578 = vmatmul.mubr.f32.gmra.mxu0 %v493
    %v579 = vpop.f32.mrf.mxu0
    %v580 = vadd.f32 0.0, %v579
    %v581 = vpop.f32.mrf.mxu0
    %582 = vmatprep.mubr.f32.mxu0 0.0
    %583 = vmatmul.mubr.f32.gmra.mxu0 %v494
    %v584 = vpop.f32.mrf.mxu0
    %v585 = vadd.f32 0.0, %v584
    %v586 = vpop.f32.mrf.mxu0
    %587 = vmatprep.mubr.f32.mxu0 0.0
    %588 = vmatmul.mubr.f32.gmra.mxu0 %v495
    %v589 = vpop.f32.mrf.mxu0
    %v590 = vadd.f32 0.0, %v589
    %v591 = vpop.f32.mrf.mxu0
    %592 = vmatprep.mubr.f32.mxu0 0.0
    %593 = vmatmul.mubr.f32.gmra.mxu0 %v496
    %v594 = vpop.f32.mrf.mxu0
    %v595 = vadd.f32 0.0, %v594
    %v596 = vpop.f32.mrf.mxu0
    %597 = vdwg.mxu0
    %v598 = vadd.f32 %v580, %v585
    %v599 = vadd.f32 %v598, %v590
    %v600 = vadd.f32 %v599, %v595
    %v601 = vrot.slane %v600, 4
    %v602 = vadd.f32 %v600, %v601
    %v603 = vrot.slane %v602, 2
    %v604 = vadd.f32 %v602, %v603
    %v605 = vrot.slane %v604, 1
    %v606 = vadd.f32 %v604, %v605
    %v607 = vmul.f32 %v493, %v493
    %v608 = vmul.f32 %v494, %v494
    %v609 = vmul.f32 %v495, %v495
    %v610 = vmul.f32 %v496, %v496
    %611 = vmatprep.subr.mxu0 0.0
    %612 = vmatpush1.msra.mxu0 %v512
    %613 = vmatprep.subr.mxu0 0.0
    %614 = vmatpush1.msra.mxu0 %v511
    %615 = vmatprep.subr.mxu0 0.0
    %616 = vmatpush1.msra.mxu0 %v510
    %617 = vmatprep.subr.mxu0 0.0
    %618 = vmatpush1.msra.mxu0 %v509
    %619 = vmatprep.subr.mxu0 0.0
    %620 = vmatpush1.msra.mxu0 %v508
    %621 = vmatprep.subr.mxu0 0.0
    %622 = vmatpush1.msra.mxu0 %v507
    %623 = vmatprep.subr.mxu0 0.0
    %624 = vmatpush1.msra.mxu0 %v506
    %625 = vmatprep.subr.mxu0 0.0
    %626 = vmatpush1.msra.mxu0 %v505
    %627 = vmatprep.subr.mxu0 0.0
    %628 = vmatpush1.msra.mxu0 %v504
    %629 = vmatprep.subr.mxu0 0.0
    %630 = vmatpush1.msra.mxu0 %v503
    %631 = vmatprep.subr.mxu0 0.0
    %632 = vmatpush1.msra.mxu0 %v502
    %633 = vmatprep.subr.mxu0 0.0
    %634 = vmatpush1.msra.mxu0 %v501
    %635 = vmatprep.subr.mxu0 0.0
    %636 = vmatpush1.msra.mxu0 %v500
    %637 = vmatprep.subr.mxu0 0.0
    %638 = vmatpush1.msra.mxu0 %v499
    %639 = vmatprep.subr.mxu0 0.0
    %640 = vmatpush1.msra.mxu0 %v498
    %641 = vmatprep.subr.mxu0 0.0
    %642 = vmatpush1.msra.mxu0 %v497
    %643 = vmatprep.subr.mxu0 0.0
    %644 = vmatpush2.msra.mxu0 0.0
    %645 = vmatprep.subr.mxu0 0.0
    %646 = vmatpush2.msra.mxu0 0.0
    %647 = vmatprep.subr.mxu0 0.0
    %648 = vmatpush2.msra.mxu0 0.0
    %649 = vmatprep.subr.mxu0 0.0
    %650 = vmatpush2.msra.mxu0 0.0
    %651 = vmatprep.subr.mxu0 0.0
    %652 = vmatpush2.msra.mxu0 0.0
    %653 = vmatprep.subr.mxu0 0.0
    %654 = vmatpush2.msra.mxu0 0.0
    %655 = vmatprep.subr.mxu0 0.0
    %656 = vmatpush2.msra.mxu0 0.0
    %657 = vmatprep.subr.mxu0 0.0
    %658 = vmatpush2.msra.mxu0 0.0
    %659 = vmatprep.subr.mxu0 0.0
    %660 = vmatpush2.msra.mxu0 0.0
    %661 = vmatprep.subr.mxu0 0.0
    %662 = vmatpush2.msra.mxu0 0.0
    %663 = vmatprep.subr.mxu0 0.0
    %664 = vmatpush2.msra.mxu0 0.0
    %665 = vmatprep.subr.mxu0 0.0
    %666 = vmatpush2.msra.mxu0 0.0
    %667 = vmatprep.subr.mxu0 0.0
    %668 = vmatpush2.msra.mxu0 0.0
    %669 = vmatprep.subr.mxu0 0.0
    %670 = vmatpush2.msra.mxu0 0.0
    %671 = vmatprep.subr.mxu0 0.0
    %672 = vmatpush2.msra.mxu0 0.0
    %673 = vmatprep.subr.mxu0 0.0
    %674 = vmatpush2.msra.mxu0 0.0
    %675 = vmatprep.mubr.f32.mxu0 0.0
    %676 = vmatmul.mubr.f32.gmra.mxu0 %v607
    %v677 = vpop.f32.mrf.mxu0
    %v678 = vadd.f32 0.0, %v677
    %v679 = vpop.f32.mrf.mxu0
    %680 = vmatprep.mubr.f32.mxu0 0.0
    %681 = vmatmul.mubr.f32.gmra.mxu0 %v608
    %v682 = vpop.f32.mrf.mxu0
    %v683 = vadd.f32 0.0, %v682
    %v684 = vpop.f32.mrf.mxu0
    %685 = vmatprep.mubr.f32.mxu0 0.0
    %686 = vmatmul.mubr.f32.gmra.mxu0 %v609
    %v687 = vpop.f32.mrf.mxu0
    %v688 = vadd.f32 0.0, %v687
    %v689 = vpop.f32.mrf.mxu0
    %690 = vmatprep.mubr.f32.mxu0 0.0
    %691 = vmatmul.mubr.f32.gmra.mxu0 %v610
    %v692 = vpop.f32.mrf.mxu0
    %v693 = vadd.f32 0.0, %v692
    %v694 = vpop.f32.mrf.mxu0
    %695 = vdwg.mxu0
    %v696 = vadd.f32 %v678, %v683
    %v697 = vadd.f32 %v696, %v688
    %v698 = vadd.f32 %v697, %v693
    %v699 = vrot.slane %v698, 4
    %v700 = vadd.f32 %v698, %v699
    %v701 = vrot.slane %v700, 2
    %v702 = vadd.f32 %v700, %v701
    %v703 = vrot.slane %v702, 1
    %v704 = vadd.f32 %v702, %v703
    %v705 = vmul.f32 %v606, 0.001953125
    %v706 = vmul.f32 %v704, 0.001953125
    %v707 = vmul.f32 %v705, %v705
    %v708 = vsub.f32 %v706, %v707
    %v709 = vld [vmem:[%s4] sm:$0x1]
    %v710 = vadd.f32 %v708, 1e-05
    %v711 = vrsqrt.pop %v710
    %v712 = vmul.f32 %v709, %v711
    %v713 = vld [vmem:[%s5] sm:$0x1]
    %v714 = vmul.f32 %v705, %v712
    %v715 = vsub.f32 %v713, %v714
    %v717 = vlaneseq
    %v718 = vshrl.u32 %v717, 7
    %v719 = vsub.s32 0, %v718
    %v720 = vrot.slane %v712, %v719
    %v722 = vmul.f32 %v493, %v720
    %v723 = vmul.f32 %v494, %v720
    %v724 = vmul.f32 %v495, %v720
    %v725 = vmul.f32 %v496, %v720
    %v727 = vlaneseq
    %v728 = vshrl.u32 %v727, 7
    %v729 = vsub.s32 0, %v728
    %v730 = vrot.slane %v715, %v729
    %v732 = vadd.f32 %v722, %v730
    %v733 = vadd.f32 %v723, %v730
    %v734 = vadd.f32 %v724, %v730
    %v735 = vadd.f32 %v725, %v730
    %v736 = vmax.f32 %v732, 0.0
    %v737 = vmax.f32 %v733, 0.0
    %v738 = vmax.f32 %v734, 0.0
    %v739 = vmax.f32 %v735, 0.0
    %v740 = vlaneseq
    %vm741 = vcmp.ge.s32.totalorder %v740, 0
    %vm742 = vcmp.lt.s32.totalorder %v740, 144
    %vm743 = vmand %vm741, %vm742
    %744 = vst.msk [vmem:[#allocation2] ss:$8 sm:$0x3] %vm743, 0.0
    %745 = vst.msk [vmem:[#allocation2] ss:$8 sm:$0x0] %vm743, 0.0
    %s746 = scalar_lea.vmem [#allocation2], 48
    %747 = vst.msk [vmem:[%s746] ss:$8 sm:$0x3] %vm743, 0.0
    %748 = vst.msk [vmem:[%s746] ss:$8 sm:$0x0] %vm743, 0.0
    %s749 = scalar_lea.vmem [#allocation2], 33
    %750 = vst.msk [vmem:[%s749] ss:$8 sm:$0x3] %vm743, 0.0
    %751 = vst.msk [vmem:[%s749] ss:$8 sm:$0x0] %vm743, 0.0
    %s752 = scalar_lea.vmem [#allocation2], 81
    %753 = vst.msk [vmem:[%s752] ss:$8 sm:$0x3] %vm743, 0.0
    %754 = vst.msk [vmem:[%s752] ss:$8 sm:$0x0] %vm743, 0.0
    %vm755 = vcmask 64512
    %756 = vst.msk [vmem:[#allocation2] sm:$0xff] %vm755, 0.0
    %757 = vst.msk [vmem:[#allocation2 + $0x10] sm:$0xff] %vm755, 0.0
    %vm758 = vcmask 58368
    %759 = vst.msk [vmem:[#allocation2 + $0x20] sm:$0x3] %vm758, 0.0
    %760 = vst.msk [vmem:[#allocation2 + $0x30] sm:$0xff] %vm755, 0.0
    %761 = vst.msk [vmem:[#allocation2 + $0x40] sm:$0xff] %vm755, 0.0
    %762 = vst.msk [vmem:[#allocation2 + $0x50] sm:$0x3] %vm758, 0.0
    %vm763 = vcmask 130112
    %764 = vst.msk [vmem:[#allocation2 + $0x8] sm:$0xff] %vm763, 0.0
    %765 = vst.msk [vmem:[#allocation2 + $0x18] sm:$0xff] %vm763, 0.0
    %vm766 = vcmask 123968
    %767 = vst.msk [vmem:[#allocation2 + $0x28] sm:$0x3] %vm766, 0.0
    %768 = vst.msk [vmem:[#allocation2 + $0x38] sm:$0xff] %vm763, 0.0
    %769 = vst.msk [vmem:[#allocation2 + $0x48] sm:$0xff] %vm763, 0.0
    %770 = vst.msk [vmem:[#allocation2 + $0x58] sm:$0x3] %vm766, 0.0
    %vm775 = vcmask 1040384
    %v776 = vrot.slane %v736, 7
    %v777 = vrot.slane %v737, 7
    %v778 = vsel %vm775, %v776, %v777
    %v779 = vrot.slane %v738, 7
    %v780 = vrot.slane %v739, 7
    %v781 = vsel %vm775, %v779, %v780
    %782 = vrot.lane.b32.xlu0 %v776, 8
    %v783 = vpop.permute.xlu0 %782
    %784 = vrot.lane.b32.xlu0 %v778, 8
    %v785 = vpop.permute.xlu0 %784
    %786 = vrot.lane.b32.xlu0 %v777, 8
    %v787 = vpop.permute.xlu0 %786
    %788 = vrot.lane.b32.xlu0 %v779, 8
    %v789 = vpop.permute.xlu0 %788
    %790 = vrot.lane.b32.xlu0 %v781, 8
    %v791 = vpop.permute.xlu0 %790
    %792 = vrot.lane.b32.xlu0 %v780, 8
    %v793 = vpop.permute.xlu0 %792
    %vm800 = vcmask 1047617
    %801 = vst.msk [vmem:[#allocation2] sm:$0xfe] %vm800, %v783
    %vm802 = vcmask 64513
    %803 = vst.msk [vmem:[#allocation2 + $0x8] sm:$0xfe] %vm802, %v783
    %vm804 = vcmask 1047616
    %805 = vst.msk [vmem:[#allocation2 + $0x10] sm:$0xff] %vm804, %v785
    %806 = vst.msk [vmem:[#allocation2 + $0x18] sm:$0xff] %vm755, %v785
    %vm807 = vcmask 1040448
    %808 = vst.msk [vmem:[#allocation2 + $0x20] sm:$0x1] %vm807, %v787
    %vm809 = vcmask 57344
    %810 = vst.msk [vmem:[#allocation2 + $0x28] sm:$0x1] %vm809, %v787
    %811 = vst.msk [vmem:[#allocation2 + $0x30] sm:$0xfe] %vm800, %v789
    %812 = vst.msk [vmem:[#allocation2 + $0x38] sm:$0xfe] %vm802, %v789
    %813 = vst.msk [vmem:[#allocation2 + $0x40] sm:$0xff] %vm804, %v791
    %814 = vst.msk [vmem:[#allocation2 + $0x48] sm:$0xff] %vm755, %v791
    %815 = vst.msk [vmem:[#allocation2 + $0x50] sm:$0x1] %vm807, %v793
    %816 = vst.msk [vmem:[#allocation2 + $0x58] sm:$0x1] %vm809, %v793
    %v817 = vld [vmem:[#allocation2] sm:$0xff]
    %v818 = vld [vmem:[#allocation2 + $0x8] sm:$0xff]
    %v819 = vld [vmem:[#allocation2 + $0x10] sm:$0xff]
    %v820 = vld [vmem:[#allocation2 + $0x18] sm:$0xff]
    %v821 = vld [vmem:[#allocation2 + $0x30] sm:$0xff]
    %v822 = vld [vmem:[#allocation2 + $0x38] sm:$0xff]
    %v823 = vld [vmem:[#allocation2 + $0x40] sm:$0xff]
    %v824 = vld [vmem:[#allocation2 + $0x48] sm:$0xff]
    %v825 = vld [vmem:[#allocation6] sm:$0xff]
    %v826 = vld [vmem:[#allocation6 + $0x8] sm:$0xff]
    %v827 = vld [vmem:[#allocation6 + $0x10] sm:$0xff]
    %v828 = vld [vmem:[#allocation6 + $0x18] sm:$0xff]
    %v829 = vld [vmem:[#allocation6 + $0x20] sm:$0xff]
    %v830 = vld [vmem:[#allocation6 + $0x28] sm:$0xff]
    %v831 = vld [vmem:[#allocation6 + $0x30] sm:$0xff]
    %v832 = vld [vmem:[#allocation6 + $0x38] sm:$0xff]
    %v833 = vld [vmem:[#allocation6 + $0x40] sm:$0xff]
    %v834 = vld [vmem:[#allocation6 + $0x48] sm:$0xff]
    %v835 = vld [vmem:[#allocation6 + $0x50] sm:$0xff]
    %v836 = vld [vmem:[#allocation6 + $0x58] sm:$0xff]
    %v837 = vld [vmem:[#allocation6 + $0x60] sm:$0xff]
    %v838 = vld [vmem:[#allocation6 + $0x68] sm:$0xff]
    %v839 = vld [vmem:[#allocation6 + $0x70] sm:$0xff]
    %v840 = vld [vmem:[#allocation6 + $0x78] sm:$0xff]
    %v841 = vld [vmem:[#allocation6 + $0x80] sm:$0xff]
    %v842 = vld [vmem:[#allocation6 + $0x88] sm:$0xff]
    %v843 = vld [vmem:[#allocation2] sm:$0xfe]
    %v844 = vld [vmem:[#allocation2 + $0x8] sm:$0xfe]
    %v845 = vld [vmem:[#allocation2 + $0x20] sm:$0x1]
    %v846 = vld [vmem:[#allocation2 + $0x28] sm:$0x1]
    %v847 = vld [vmem:[#allocation2 + $0x30] sm:$0xfe]
    %v848 = vld [vmem:[#allocation2 + $0x38] sm:$0xfe]
    %v849 = vld [vmem:[#allocation2 + $0x50] sm:$0x1]
    %v850 = vld [vmem:[#allocation2 + $0x58] sm:$0x1]
    %v863 = vrot.slane %v843, 1
    %v864 = vrot.slane %v819, 1
    %v865 = vsel %vm107, %v863, %v864
    %v866 = vrot.slane %v844, 1
    %v867 = vrot.slane %v820, 1
    %v868 = vsel %vm107, %v866, %v867
    %v869 = vrot.slane %v845, 1
    %v870 = vsel %vm107, %v864, %v869
    %v871 = vrot.slane %v846, 1
    %v872 = vsel %vm107, %v867, %v871
    %v873 = vrot.slane %v847, 1
    %v874 = vrot.slane %v823, 1
    %v875 = vsel %vm107, %v873, %v874
    %v876 = vrot.slane %v848, 1
    %v877 = vrot.slane %v824, 1
    %v878 = vsel %vm107, %v876, %v877
    %v879 = vrot.slane %v849, 1
    %v880 = vsel %vm107, %v874, %v879
    %v881 = vrot.slane %v850, 1
    %v882 = vsel %vm107, %v877, %v881
    %s887 = scalar_lea.vmem [#allocation6], 144
    %v888 = vld [vmem:[%s887] sm:$0xff]
    %v889 = vld [vmem:[%s887 + $0x8] sm:$0xff]
    %v890 = vld [vmem:[%s887 + $0x10] sm:$0xff]
    %v891 = vld [vmem:[%s887 + $0x18] sm:$0xff]
    %v892 = vld [vmem:[%s887 + $0x20] sm:$0xff]
    %v893 = vld [vmem:[%s887 + $0x28] sm:$0xff]
    %v894 = vld [vmem:[%s887 + $0x30] sm:$0xff]
    %v895 = vld [vmem:[%s887 + $0x38] sm:$0xff]
    %v896 = vld [vmem:[%s887 + $0x40] sm:$0xff]
    %v897 = vld [vmem:[%s887 + $0x48] sm:$0xff]
    %v898 = vld [vmem:[%s887 + $0x50] sm:$0xff]
    %v899 = vld [vmem:[%s887 + $0x58] sm:$0xff]
    %v900 = vld [vmem:[%s887 + $0x60] sm:$0xff]
    %v901 = vld [vmem:[%s887 + $0x68] sm:$0xff]
    %v902 = vld [vmem:[%s887 + $0x70] sm:$0xff]
    %v903 = vld [vmem:[%s887 + $0x78] sm:$0xff]
    %v904 = vld [vmem:[%s887 + $0x80] sm:$0xff]
    %v905 = vld [vmem:[%s887 + $0x88] sm:$0xff]
    %v906 = vsel %vm151, %v868, 0
    %v908 = vsel %vm151, %v872, 0
    %v910 = vsel %vm151, %v878, 0
    %v912 = vsel %vm151, %v882, 0
    %914 = vmatprep.subr.mxu0 0.0
    %915 = vmatpush1.msra.mxu0 %v903
    %916 = vmatprep.subr.mxu0 0.0
    %917 = vmatpush1.msra.mxu0 %v902
    %918 = vmatprep.subr.mxu0 0.0
    %919 = vmatpush1.msra.mxu0 %v901
    %920 = vmatprep.subr.mxu0 0.0
    %921 = vmatpush1.msra.mxu0 %v900
    %922 = vmatprep.subr.mxu0 0.0
    %923 = vmatpush1.msra.mxu0 %v899
    %924 = vmatprep.subr.mxu0 0.0
    %925 = vmatpush1.msra.mxu0 %v898
    %926 = vmatprep.subr.mxu0 0.0
    %927 = vmatpush1.msra.mxu0 %v897
    %928 = vmatprep.subr.mxu0 0.0
    %929 = vmatpush1.msra.mxu0 %v896
    %930 = vmatprep.subr.mxu0 0.0
    %931 = vmatpush1.msra.mxu0 %v895
    %932 = vmatprep.subr.mxu0 0.0
    %933 = vmatpush1.msra.mxu0 %v894
    %934 = vmatprep.subr.mxu0 0.0
    %935 = vmatpush1.msra.mxu0 %v893
    %936 = vmatprep.subr.mxu0 0.0
    %937 = vmatpush1.msra.mxu0 %v892
    %938 = vmatprep.subr.mxu0 0.0
    %939 = vmatpush1.msra.mxu0 %v891
    %940 = vmatprep.subr.mxu0 0.0
    %941 = vmatpush1.msra.mxu0 %v890
    %942 = vmatprep.subr.mxu0 0.0
    %943 = vmatpush1.msra.mxu0 %v889
    %944 = vmatprep.subr.mxu0 0.0
    %945 = vmatpush1.msra.mxu0 %v888
    %946 = vmatprep.subr.mxu0 0.0
    %947 = vmatpush2.msra.mxu0 0.0
    %948 = vmatprep.subr.mxu0 0.0
    %949 = vmatpush2.msra.mxu0 0.0
    %950 = vmatprep.subr.mxu0 0.0
    %951 = vmatpush2.msra.mxu0 0.0
    %952 = vmatprep.subr.mxu0 0.0
    %953 = vmatpush2.msra.mxu0 0.0
    %954 = vmatprep.subr.mxu0 0.0
    %955 = vmatpush2.msra.mxu0 0.0
    %956 = vmatprep.subr.mxu0 0.0
    %957 = vmatpush2.msra.mxu0 0.0
    %958 = vmatprep.subr.mxu0 0.0
    %959 = vmatpush2.msra.mxu0 0.0
    %960 = vmatprep.subr.mxu0 0.0
    %961 = vmatpush2.msra.mxu0 0.0
    %962 = vmatprep.subr.mxu0 0.0
    %963 = vmatpush2.msra.mxu0 0.0
    %964 = vmatprep.subr.mxu0 0.0
    %965 = vmatpush2.msra.mxu0 0.0
    %966 = vmatprep.subr.mxu0 0.0
    %967 = vmatpush2.msra.mxu0 0.0
    %968 = vmatprep.subr.mxu0 0.0
    %969 = vmatpush2.msra.mxu0 0.0
    %970 = vmatprep.subr.mxu0 0.0
    %971 = vmatpush2.msra.mxu0 0.0
    %972 = vmatprep.subr.mxu0 0.0
    %973 = vmatpush2.msra.mxu0 0.0
    %974 = vmatprep.subr.mxu0 0.0
    %975 = vmatpush2.msra.mxu0 %v905
    %976 = vmatprep.subr.mxu0 0.0
    %977 = vmatpush2.msra.mxu0 %v904
    %978 = vmatprep.mubr.f32.mxu0 %v906
    %979 = vmatmul.mubr.f32.gmra.mxu0 %v865
    %v980 = vpop.f32.mrf.mxu0
    %v981 = vadd.f32 0.0, %v980
    %v982 = vpop.f32.mrf.mxu0
    %983 = vmatprep.mubr.f32.mxu0 %v908
    %984 = vmatmul.mubr.f32.gmra.mxu0 %v870
    %v985 = vpop.f32.mrf.mxu0
    %v986 = vadd.f32 0.0, %v985
    %v987 = vpop.f32.mrf.mxu0
    %988 = vmatprep.mubr.f32.mxu0 %v910
    %989 = vmatmul.mubr.f32.gmra.mxu0 %v875
    %v990 = vpop.f32.mrf.mxu0
    %v991 = vadd.f32 0.0, %v990
    %v992 = vpop.f32.mrf.mxu0
    %993 = vmatprep.mubr.f32.mxu0 %v912
    %994 = vmatmul.mubr.f32.gmra.mxu0 %v880
    %v995 = vpop.f32.mrf.mxu0
    %v996 = vadd.f32 0.0, %v995
    %v997 = vpop.f32.mrf.mxu0
    %998 = vdwg.mxu0
    %v1000 = vsel %vm151, %v818, 0
    %v1002 = vsel %vm151, %v820, 0
    %v1005 = vsel %vm151, %v822, 0
    %v1007 = vsel %vm151, %v824, 0
    %1009 = vmatprep.subr.mxu0 0.0
    %1010 = vmatpush1.msra.mxu0 %v840
    %1011 = vmatprep.subr.mxu0 0.0
    %1012 = vmatpush1.msra.mxu0 %v839
    %1013 = vmatprep.subr.mxu0 0.0
    %1014 = vmatpush1.msra.mxu0 %v838
    %1015 = vmatprep.subr.mxu0 0.0
    %1016 = vmatpush1.msra.mxu0 %v837
    %1017 = vmatprep.subr.mxu0 0.0
    %1018 = vmatpush1.msra.mxu0 %v836
    %1019 = vmatprep.subr.mxu0 0.0
    %1020 = vmatpush1.msra.mxu0 %v835
    %1021 = vmatprep.subr.mxu0 0.0
    %1022 = vmatpush1.msra.mxu0 %v834
    %1023 = vmatprep.subr.mxu0 0.0
    %1024 = vmatpush1.msra.mxu0 %v833
    %1025 = vmatprep.subr.mxu0 0.0
    %1026 = vmatpush1.msra.mxu0 %v832
    %1027 = vmatprep.subr.mxu0 0.0
    %1028 = vmatpush1.msra.mxu0 %v831
    %1029 = vmatprep.subr.mxu0 0.0
    %1030 = vmatpush1.msra.mxu0 %v830
    %1031 = vmatprep.subr.mxu0 0.0
    %1032 = vmatpush1.msra.mxu0 %v829
    %1033 = vmatprep.subr.mxu0 0.0
    %1034 = vmatpush1.msra.mxu0 %v828
    %1035 = vmatprep.subr.mxu0 0.0
    %1036 = vmatpush1.msra.mxu0 %v827
    %1037 = vmatprep.subr.mxu0 0.0
    %1038 = vmatpush1.msra.mxu0 %v826
    %1039 = vmatprep.subr.mxu0 0.0
    %1040 = vmatpush1.msra.mxu0 %v825
    %1041 = vmatprep.subr.mxu0 0.0
    %1042 = vmatpush2.msra.mxu0 0.0
    %1043 = vmatprep.subr.mxu0 0.0
    %1044 = vmatpush2.msra.mxu0 0.0
    %1045 = vmatprep.subr.mxu0 0.0
    %1046 = vmatpush2.msra.mxu0 0.0
    %1047 = vmatprep.subr.mxu0 0.0
    %1048 = vmatpush2.msra.mxu0 0.0
    %1049 = vmatprep.subr.mxu0 0.0
    %1050 = vmatpush2.msra.mxu0 0.0
    %1051 = vmatprep.subr.mxu0 0.0
    %1052 = vmatpush2.msra.mxu0 0.0
    %1053 = vmatprep.subr.mxu0 0.0
    %1054 = vmatpush2.msra.mxu0 0.0
    %1055 = vmatprep.subr.mxu0 0.0
    %1056 = vmatpush2.msra.mxu0 0.0
    %1057 = vmatprep.subr.mxu0 0.0
    %1058 = vmatpush2.msra.mxu0 0.0
    %1059 = vmatprep.subr.mxu0 0.0
    %1060 = vmatpush2.msra.mxu0 0.0
    %1061 = vmatprep.subr.mxu0 0.0
    %1062 = vmatpush2.msra.mxu0 0.0
    %1063 = vmatprep.subr.mxu0 0.0
    %1064 = vmatpush2.msra.mxu0 0.0
    %1065 = vmatprep.subr.mxu0 0.0
    %1066 = vmatpush2.msra.mxu0 0.0
    %1067 = vmatprep.subr.mxu0 0.0
    %1068 = vmatpush2.msra.mxu0 0.0
    %1069 = vmatprep.subr.mxu0 0.0
    %1070 = vmatpush2.msra.mxu0 %v842
    %1071 = vmatprep.subr.mxu0 0.0
    %1072 = vmatpush2.msra.mxu0 %v841
    %1073 = vmatprep.mubr.f32.mxu0 %v1000
    %1074 = vmatmul.mubr.f32.gmra.mxu0 %v817
    %v1075 = vpop.f32.mrf.mxu0
    %v1076 = vadd.f32 %v981, %v1075
    %v1077 = vpop.f32.mrf.mxu0
    %1078 = vmatprep.mubr.f32.mxu0 %v1002
    %1079 = vmatmul.mubr.f32.gmra.mxu0 %v819
    %v1080 = vpop.f32.mrf.mxu0
    %v1081 = vadd.f32 %v986, %v1080
    %v1082 = vpop.f32.mrf.mxu0
    %1083 = vmatprep.mubr.f32.mxu0 %v1005
    %1084 = vmatmul.mubr.f32.gmra.mxu0 %v821
    %v1085 = vpop.f32.mrf.mxu0
    %v1086 = vadd.f32 %v991, %v1085
    %v1087 = vpop.f32.mrf.mxu0
    %1088 = vmatprep.mubr.f32.mxu0 %v1007
    %1089 = vmatmul.mubr.f32.gmra.mxu0 %v823
    %v1090 = vpop.f32.mrf.mxu0
    %v1091 = vadd.f32 %v996, %v1090
    %v1092 = vpop.f32.mrf.mxu0
    %1093 = vdwg.mxu0
    %v1094 = vld [vmem:[#allocation2] sm:$0xfc]
    %v1095 = vld [vmem:[#allocation2 + $0x8] sm:$0xfc]
    %v1096 = vld [vmem:[#allocation2 + $0x20] sm:$0x3]
    %v1097 = vld [vmem:[#allocation2 + $0x28] sm:$0x3]
    %v1098 = vld [vmem:[#allocation2 + $0x30] sm:$0xfc]
    %v1099 = vld [vmem:[#allocation2 + $0x38] sm:$0xfc]
    %v1100 = vld [vmem:[#allocation2 + $0x50] sm:$0x3]
    %v1101 = vld [vmem:[#allocation2 + $0x58] sm:$0x3]
    %v1110 = vrot.slane %v1094, 2
    %v1111 = vrot.slane %v819, 2
    %v1112 = vsel %vm356, %v1110, %v1111
    %v1113 = vrot.slane %v1095, 2
    %v1114 = vrot.slane %v820, 2
    %v1115 = vsel %vm356, %v1113, %v1114
    %v1116 = vrot.slane %v1096, 2
    %v1117 = vsel %vm356, %v1111, %v1116
    %v1118 = vrot.slane %v1097, 2
    %v1119 = vsel %vm356, %v1114, %v1118
    %v1120 = vrot.slane %v1098, 2
    %v1121 = vrot.slane %v823, 2
    %v1122 = vsel %vm356, %v1120, %v1121
    %v1123 = vrot.slane %v1099, 2
    %v1124 = vrot.slane %v824, 2
    %v1125 = vsel %vm356, %v1123, %v1124
    %v1126 = vrot.slane %v1100, 2
    %v1127 = vsel %vm356, %v1121, %v1126
    %v1128 = vrot.slane %v1101, 2
    %v1129 = vsel %vm356, %v1124, %v1128
    %s1134 = scalar_lea.vmem [#allocation6], 288
    %v1135 = vld [vmem:[%s1134] sm:$0xff]
    %v1136 = vld [vmem:[%s1134 + $0x8] sm:$0xff]
    %v1137 = vld [vmem:[%s1134 + $0x10] sm:$0xff]
    %v1138 = vld [vmem:[%s1134 + $0x18] sm:$0xff]
    %v1139 = vld [vmem:[%s1134 + $0x20] sm:$0xff]
    %v1140 = vld [vmem:[%s1134 + $0x28] sm:$0xff]
    %v1141 = vld [vmem:[%s1134 + $0x30] sm:$0xff]
    %v1142 = vld [vmem:[%s1134 + $0x38] sm:$0xff]
    %v1143 = vld [vmem:[%s1134 + $0x40] sm:$0xff]
    %v1144 = vld [vmem:[%s1134 + $0x48] sm:$0xff]
    %v1145 = vld [vmem:[%s1134 + $0x50] sm:$0xff]
    %v1146 = vld [vmem:[%s1134 + $0x58] sm:$0xff]
    %v1147 = vld [vmem:[%s1134 + $0x60] sm:$0xff]
    %v1148 = vld [vmem:[%s1134 + $0x68] sm:$0xff]
    %v1149 = vld [vmem:[%s1134 + $0x70] sm:$0xff]
    %v1150 = vld [vmem:[%s1134 + $0x78] sm:$0xff]
    %v1151 = vld [vmem:[%s1134 + $0x80] sm:$0xff]
    %v1152 = vld [vmem:[%s1134 + $0x88] sm:$0xff]
    %v1153 = vsel %vm151, %v1115, 0
    %v1155 = vsel %vm151, %v1119, 0
    %v1157 = vsel %vm151, %v1125, 0
    %v1159 = vsel %vm151, %v1129, 0
    %1161 = vmatprep.subr.mxu0 0.0
    %1162 = vmatpush1.msra.mxu0 %v1150
    %1163 = vmatprep.subr.mxu0 0.0
    %1164 = vmatpush1.msra.mxu0 %v1149
    %1165 = vmatprep.subr.mxu0 0.0
    %1166 = vmatpush1.msra.mxu0 %v1148
    %1167 = vmatprep.subr.mxu0 0.0
    %1168 = vmatpush1.msra.mxu0 %v1147
    %1169 = vmatprep.subr.mxu0 0.0
    %1170 = vmatpush1.msra.mxu0 %v1146
    %1171 = vmatprep.subr.mxu0 0.0
    %1172 = vmatpush1.msra.mxu0 %v1145
    %1173 = vmatprep.subr.mxu0 0.0
    %1174 = vmatpush1.msra.mxu0 %v1144
    %1175 = vmatprep.subr.mxu0 0.0
    %1176 = vmatpush1.msra.mxu0 %v1143
    %1177 = vmatprep.subr.mxu0 0.0
    %1178 = vmatpush1.msra.mxu0 %v1142
    %1179 = vmatprep.subr.mxu0 0.0
    %1180 = vmatpush1.msra.mxu0 %v1141
    %1181 = vmatprep.subr.mxu0 0.0
    %1182 = vmatpush1.msra.mxu0 %v1140
    %1183 = vmatprep.subr.mxu0 0.0
    %1184 = vmatpush1.msra.mxu0 %v1139
    %1185 = vmatprep.subr.mxu0 0.0
    %1186 = vmatpush1.msra.mxu0 %v1138
    %1187 = vmatprep.subr.mxu0 0.0
    %1188 = vmatpush1.msra.mxu0 %v1137
    %1189 = vmatprep.subr.mxu0 0.0
    %1190 = vmatpush1.msra.mxu0 %v1136
    %1191 = vmatprep.subr.mxu0 0.0
    %1192 = vmatpush1.msra.mxu0 %v1135
    %1193 = vmatprep.subr.mxu0 0.0
    %1194 = vmatpush2.msra.mxu0 0.0
    %1195 = vmatprep.subr.mxu0 0.0
    %1196 = vmatpush2.msra.mxu0 0.0
    %1197 = vmatprep.subr.mxu0 0.0
    %1198 = vmatpush2.msra.mxu0 0.0
    %1199 = vmatprep.subr.mxu0 0.0
    %1200 = vmatpush2.msra.mxu0 0.0
    %1201 = vmatprep.subr.mxu0 0.0
    %1202 = vmatpush2.msra.mxu0 0.0
    %1203 = vmatprep.subr.mxu0 0.0
    %1204 = vmatpush2.msra.mxu0 0.0
    %1205 = vmatprep.subr.mxu0 0.0
    %1206 = vmatpush2.msra.mxu0 0.0
    %1207 = vmatprep.subr.mxu0 0.0
    %1208 = vmatpush2.msra.mxu0 0.0
    %1209 = vmatprep.subr.mxu0 0.0
    %1210 = vmatpush2.msra.mxu0 0.0
    %1211 = vmatprep.subr.mxu0 0.0
    %1212 = vmatpush2.msra.mxu0 0.0
    %1213 = vmatprep.subr.mxu0 0.0
    %1214 = vmatpush2.msra.mxu0 0.0
    %1215 = vmatprep.subr.mxu0 0.0
    %1216 = vmatpush2.msra.mxu0 0.0
    %1217 = vmatprep.subr.mxu0 0.0
    %1218 = vmatpush2.msra.mxu0 0.0
    %1219 = vmatprep.subr.mxu0 0.0
    %1220 = vmatpush2.msra.mxu0 0.0
    %1221 = vmatprep.subr.mxu0 0.0
    %1222 = vmatpush2.msra.mxu0 %v1152
    %1223 = vmatprep.subr.mxu0 0.0
    %1224 = vmatpush2.msra.mxu0 %v1151
    %1225 = vmatprep.mubr.f32.mxu0 %v1153
    %1226 = vmatmul.mubr.f32.gmra.mxu0 %v1112
    %v1227 = vpop.f32.mrf.mxu0
    %v1228 = vadd.f32 0.0, %v1227
    %v1229 = vpop.f32.mrf.mxu0
    %1230 = vmatprep.mubr.f32.mxu0 %v1155
    %1231 = vmatmul.mubr.f32.gmra.mxu0 %v1117
    %v1232 = vpop.f32.mrf.mxu0
    %v1233 = vadd.f32 0.0, %v1232
    %v1234 = vpop.f32.mrf.mxu0
    %1235 = vmatprep.mubr.f32.mxu0 %v1157
    %1236 = vmatmul.mubr.f32.gmra.mxu0 %v1122
    %v1237 = vpop.f32.mrf.mxu0
    %v1238 = vadd.f32 0.0, %v1237
    %v1239 = vpop.f32.mrf.mxu0
    %1240 = vmatprep.mubr.f32.mxu0 %v1159
    %1241 = vmatmul.mubr.f32.gmra.mxu0 %v1127
    %v1242 = vpop.f32.mrf.mxu0
    %v1243 = vadd.f32 0.0, %v1242
    %v1244 = vpop.f32.mrf.mxu0
    %1245 = vdwg.mxu0
    %v1246 = vadd.f32 %v1076, %v1228
    %v1247 = vadd.f32 %v1081, %v1233
    %v1248 = vadd.f32 %v1086, %v1238
    %v1249 = vadd.f32 %v1091, %v1243
    %v1250 = vld [vmem:[%s8] sm:$0xff]
    %v1251 = vld [vmem:[%s8 + $0x8] sm:$0xff]
    %v1252 = vld [vmem:[%s8 + $0x10] sm:$0xff]
    %v1253 = vld [vmem:[%s8 + $0x18] sm:$0xff]
    %v1254 = vld [vmem:[%s8 + $0x20] sm:$0xff]
    %v1255 = vld [vmem:[%s8 + $0x28] sm:$0xff]
    %v1256 = vld [vmem:[%s8 + $0x30] sm:$0xff]
    %v1257 = vld [vmem:[%s8 + $0x38] sm:$0xff]
    %v1258 = vld [vmem:[%s8 + $0x40] sm:$0xff]
    %v1259 = vld [vmem:[%s8 + $0x48] sm:$0xff]
    %v1260 = vld [vmem:[%s8 + $0x50] sm:$0xff]
    %v1261 = vld [vmem:[%s8 + $0x58] sm:$0xff]
    %v1262 = vld [vmem:[%s8 + $0x60] sm:$0xff]
    %v1263 = vld [vmem:[%s8 + $0x68] sm:$0xff]
    %v1264 = vld [vmem:[%s8 + $0x70] sm:$0xff]
    %v1265 = vld [vmem:[%s8 + $0x78] sm:$0xff]
    %1266 = vmatprep.subr.mxu0 0.0
    %1267 = vmatpush1.msra.mxu0 %v1265
    %1268 = vmatprep.subr.mxu0 0.0
    %1269 = vmatpush1.msra.mxu0 %v1264
    %1270 = vmatprep.subr.mxu0 0.0
    %1271 = vmatpush1.msra.mxu0 %v1263
    %1272 = vmatprep.subr.mxu0 0.0
    %1273 = vmatpush1.msra.mxu0 %v1262
    %1274 = vmatprep.subr.mxu0 0.0
    %1275 = vmatpush1.msra.mxu0 %v1261
    %1276 = vmatprep.subr.mxu0 0.0
    %1277 = vmatpush1.msra.mxu0 %v1260
    %1278 = vmatprep.subr.mxu0 0.0
    %1279 = vmatpush1.msra.mxu0 %v1259
    %1280 = vmatprep.subr.mxu0 0.0
    %1281 = vmatpush1.msra.mxu0 %v1258
    %1282 = vmatprep.subr.mxu0 0.0
    %1283 = vmatpush1.msra.mxu0 %v1257
    %1284 = vmatprep.subr.mxu0 0.0
    %1285 = vmatpush1.msra.mxu0 %v1256
    %1286 = vmatprep.subr.mxu0 0.0
    %1287 = vmatpush1.msra.mxu0 %v1255
    %1288 = vmatprep.subr.mxu0 0.0
    %1289 = vmatpush1.msra.mxu0 %v1254
    %1290 = vmatprep.subr.mxu0 0.0
    %1291 = vmatpush1.msra.mxu0 %v1253
    %1292 = vmatprep.subr.mxu0 0.0
    %1293 = vmatpush1.msra.mxu0 %v1252
    %1294 = vmatprep.subr.mxu0 0.0
    %1295 = vmatpush1.msra.mxu0 %v1251
    %1296 = vmatprep.subr.mxu0 0.0
    %1297 = vmatpush1.msra.mxu0 %v1250
    %1298 = vmatprep.subr.mxu0 0.0
    %1299 = vmatpush2.msra.mxu0 0.0
    %1300 = vmatprep.subr.mxu0 0.0
    %1301 = vmatpush2.msra.mxu0 0.0
    %1302 = vmatprep.subr.mxu0 0.0
    %1303 = vmatpush2.msra.mxu0 0.0
    %1304 = vmatprep.subr.mxu0 0.0
    %1305 = vmatpush2.msra.mxu0 0.0
    %1306 = vmatprep.subr.mxu0 0.0
    %1307 = vmatpush2.msra.mxu0 0.0
    %1308 = vmatprep.subr.mxu0 0.0
    %1309 = vmatpush2.msra.mxu0 0.0
    %1310 = vmatprep.subr.mxu0 0.0
    %1311 = vmatpush2.msra.mxu0 0.0
    %1312 = vmatprep.subr.mxu0 0.0
    %1313 = vmatpush2.msra.mxu0 0.0
    %1314 = vmatprep.subr.mxu0 0.0
    %1315 = vmatpush2.msra.mxu0 0.0
    %1316 = vmatprep.subr.mxu0 0.0
    %1317 = vmatpush2.msra.mxu0 0.0
    %1318 = vmatprep.subr.mxu0 0.0
    %1319 = vmatpush2.msra.mxu0 0.0
    %1320 = vmatprep.subr.mxu0 0.0
    %1321 = vmatpush2.msra.mxu0 0.0
    %1322 = vmatprep.subr.mxu0 0.0
    %1323 = vmatpush2.msra.mxu0 0.0
    %1324 = vmatprep.subr.mxu0 0.0
    %1325 = vmatpush2.msra.mxu0 0.0
    %1326 = vmatprep.subr.mxu0 0.0
    %1327 = vmatpush2.msra.mxu0 0.0
    %1328 = vmatprep.subr.mxu0 0.0
    %1329 = vmatpush2.msra.mxu0 0.0
    %1330 = vmatprep.mubr.f32.mxu0 0.0
    %1331 = vmatmul.mubr.f32.gmra.mxu0 %v1246
    %v1332 = vpop.f32.mrf.mxu0
    %v1333 = vadd.f32 0.0, %v1332
    %v1334 = vpop.f32.mrf.mxu0
    %1335 = vmatprep.mubr.f32.mxu0 0.0
    %1336 = vmatmul.mubr.f32.gmra.mxu0 %v1247
    %v1337 = vpop.f32.mrf.mxu0
    %v1338 = vadd.f32 0.0, %v1337
    %v1339 = vpop.f32.mrf.mxu0
    %1340 = vmatprep.mubr.f32.mxu0 0.0
    %1341 = vmatmul.mubr.f32.gmra.mxu0 %v1248
    %v1342 = vpop.f32.mrf.mxu0
    %v1343 = vadd.f32 0.0, %v1342
    %v1344 = vpop.f32.mrf.mxu0
    %1345 = vmatprep.mubr.f32.mxu0 0.0
    %1346 = vmatmul.mubr.f32.gmra.mxu0 %v1249
    %v1347 = vpop.f32.mrf.mxu0
    %v1348 = vadd.f32 0.0, %v1347
    %v1349 = vpop.f32.mrf.mxu0
    %1350 = vdwg.mxu0
    %v1351 = vadd.f32 %v1333, %v1338
    %v1352 = vadd.f32 %v1351, %v1343
    %v1353 = vadd.f32 %v1352, %v1348
    %v1354 = vrot.slane %v1353, 4
    %v1355 = vadd.f32 %v1353, %v1354
    %v1356 = vrot.slane %v1355, 2
    %v1357 = vadd.f32 %v1355, %v1356
    %v1358 = vrot.slane %v1357, 1
    %v1359 = vadd.f32 %v1357, %v1358
    %v1360 = vmul.f32 %v1246, %v1246
    %v1361 = vmul.f32 %v1247, %v1247
    %v1362 = vmul.f32 %v1248, %v1248
    %v1363 = vmul.f32 %v1249, %v1249
    %1364 = vmatprep.subr.mxu0 0.0
    %1365 = vmatpush1.msra.mxu0 %v1265
    %1366 = vmatprep.subr.mxu0 0.0
    %1367 = vmatpush1.msra.mxu0 %v1264
    %1368 = vmatprep.subr.mxu0 0.0
    %1369 = vmatpush1.msra.mxu0 %v1263
    %1370 = vmatprep.subr.mxu0 0.0
    %1371 = vmatpush1.msra.mxu0 %v1262
    %1372 = vmatprep.subr.mxu0 0.0
    %1373 = vmatpush1.msra.mxu0 %v1261
    %1374 = vmatprep.subr.mxu0 0.0
    %1375 = vmatpush1.msra.mxu0 %v1260
    %1376 = vmatprep.subr.mxu0 0.0
    %1377 = vmatpush1.msra.mxu0 %v1259
    %1378 = vmatprep.subr.mxu0 0.0
    %1379 = vmatpush1.msra.mxu0 %v1258
    %1380 = vmatprep.subr.mxu0 0.0
    %1381 = vmatpush1.msra.mxu0 %v1257
    %1382 = vmatprep.subr.mxu0 0.0
    %1383 = vmatpush1.msra.mxu0 %v1256
    %1384 = vmatprep.subr.mxu0 0.0
    %1385 = vmatpush1.msra.mxu0 %v1255
    %1386 = vmatprep.subr.mxu0 0.0
    %1387 = vmatpush1.msra.mxu0 %v1254
    %1388 = vmatprep.subr.mxu0 0.0
    %1389 = vmatpush1.msra.mxu0 %v1253
    %1390 = vmatprep.subr.mxu0 0.0
    %1391 = vmatpush1.msra.mxu0 %v1252
    %1392 = vmatprep.subr.mxu0 0.0
    %1393 = vmatpush1.msra.mxu0 %v1251
    %1394 = vmatprep.subr.mxu0 0.0
    %1395 = vmatpush1.msra.mxu0 %v1250
    %1396 = vmatprep.subr.mxu0 0.0
    %1397 = vmatpush2.msra.mxu0 0.0
    %1398 = vmatprep.subr.mxu0 0.0
    %1399 = vmatpush2.msra.mxu0 0.0
    %1400 = vmatprep.subr.mxu0 0.0
    %1401 = vmatpush2.msra.mxu0 0.0
    %1402 = vmatprep.subr.mxu0 0.0
    %1403 = vmatpush2.msra.mxu0 0.0
    %1404 = vmatprep.subr.mxu0 0.0
    %1405 = vmatpush2.msra.mxu0 0.0
    %1406 = vmatprep.subr.mxu0 0.0
    %1407 = vmatpush2.msra.mxu0 0.0
    %1408 = vmatprep.subr.mxu0 0.0
    %1409 = vmatpush2.msra.mxu0 0.0
    %1410 = vmatprep.subr.mxu0 0.0
    %1411 = vmatpush2.msra.mxu0 0.0
    %1412 = vmatprep.subr.mxu0 0.0
    %1413 = vmatpush2.msra.mxu0 0.0
    %1414 = vmatprep.subr.mxu0 0.0
    %1415 = vmatpush2.msra.mxu0 0.0
    %1416 = vmatprep.subr.mxu0 0.0
    %1417 = vmatpush2.msra.mxu0 0.0
    %1418 = vmatprep.subr.mxu0 0.0
    %1419 = vmatpush2.msra.mxu0 0.0
    %1420 = vmatprep.subr.mxu0 0.0
    %1421 = vmatpush2.msra.mxu0 0.0
    %1422 = vmatprep.subr.mxu0 0.0
    %1423 = vmatpush2.msra.mxu0 0.0
    %1424 = vmatprep.subr.mxu0 0.0
    %1425 = vmatpush2.msra.mxu0 0.0
    %1426 = vmatprep.subr.mxu0 0.0
    %1427 = vmatpush2.msra.mxu0 0.0
    %1428 = vmatprep.mubr.f32.mxu0 0.0
    %1429 = vmatmul.mubr.f32.gmra.mxu0 %v1360
    %v1430 = vpop.f32.mrf.mxu0
    %v1431 = vadd.f32 0.0, %v1430
    %v1432 = vpop.f32.mrf.mxu0
    %1433 = vmatprep.mubr.f32.mxu0 0.0
    %1434 = vmatmul.mubr.f32.gmra.mxu0 %v1361
    %v1435 = vpop.f32.mrf.mxu0
    %v1436 = vadd.f32 0.0, %v1435
    %v1437 = vpop.f32.mrf.mxu0
    %1438 = vmatprep.mubr.f32.mxu0 0.0
    %1439 = vmatmul.mubr.f32.gmra.mxu0 %v1362
    %v1440 = vpop.f32.mrf.mxu0
    %v1441 = vadd.f32 0.0, %v1440
    %v1442 = vpop.f32.mrf.mxu0
    %1443 = vmatprep.mubr.f32.mxu0 0.0
    %1444 = vmatmul.mubr.f32.gmra.mxu0 %v1363
    %v1445 = vpop.f32.mrf.mxu0
    %v1446 = vadd.f32 0.0, %v1445
    %v1447 = vpop.f32.mrf.mxu0
    %1448 = vdwg.mxu0
    %v1449 = vadd.f32 %v1431, %v1436
    %v1450 = vadd.f32 %v1449, %v1441
    %v1451 = vadd.f32 %v1450, %v1446
    %v1452 = vrot.slane %v1451, 4
    %v1453 = vadd.f32 %v1451, %v1452
    %v1454 = vrot.slane %v1453, 2
    %v1455 = vadd.f32 %v1453, %v1454
    %v1456 = vrot.slane %v1455, 1
    %v1457 = vadd.f32 %v1455, %v1456
    %v1458 = vmul.f32 %v1359, 0.001953125
    %v1459 = vmul.f32 %v1457, 0.001953125
    %v1460 = vmul.f32 %v1458, %v1458
    %v1461 = vsub.f32 %v1459, %v1460
    %v1462 = vld [vmem:[%s6] sm:$0x1]
    %v1463 = vadd.f32 %v1461, 1e-05
    %v1464 = vrsqrt.pop %v1463
    %v1465 = vmul.f32 %v1462, %v1464
    %v1466 = vld [vmem:[%s7] sm:$0x1]
    %v1467 = vmul.f32 %v1458, %v1465
    %v1468 = vsub.f32 %v1466, %v1467
    %v1470 = vlaneseq
    %v1471 = vshrl.u32 %v1470, 7
    %v1472 = vsub.s32 0, %v1471
    %v1473 = vrot.slane %v1465, %v1472
    %v1475 = vmul.f32 %v1246, %v1473
    %v1476 = vmul.f32 %v1247, %v1473
    %v1477 = vmul.f32 %v1248, %v1473
    %v1478 = vmul.f32 %v1249, %v1473
    %v1480 = vlaneseq
    %v1481 = vshrl.u32 %v1480, 7
    %v1482 = vsub.s32 0, %v1481
    %v1483 = vrot.slane %v1468, %v1482
    %v1485 = vadd.f32 %v1475, %v1483
    %v1486 = vadd.f32 %v1476, %v1483
    %v1487 = vadd.f32 %v1477, %v1483
    %v1488 = vadd.f32 %v1478, %v1483
    %v1489 = vld [vmem:[%s1] sm:$0xff]
    %v1490 = vld [vmem:[%s1 + $0x8] sm:$0xff]
    %v1491 = vld [vmem:[%s1 + $0x10] sm:$0xff]
    %v1492 = vld [vmem:[%s1 + $0x18] sm:$0xff]
    %v1493 = vadd.f32 %v1485, %v1489
    %v1494 = vadd.f32 %v1486, %v1490
    %v1495 = vadd.f32 %v1487, %v1491
    %v1496 = vadd.f32 %v1488, %v1492
    %v1497 = vmax.f32 %v1493, 0.0
    %v1498 = vmax.f32 %v1494, 0.0
    %v1499 = vmax.f32 %v1495, 0.0
    %v1500 = vmax.f32 %v1496, 0.0
    %1501 = vst [vmem:[#allocation8] sm:$0xff] %v1497
    %1502 = vst [vmem:[#allocation8 + $0x8] sm:$0xff] %v1498
    %1503 = vst [vmem:[#allocation8 + $0x10] sm:$0xff] %v1499
    %1504 = vst [vmem:[#allocation8 + $0x18] sm:$0xff] %v1500
    // Predicated region
    $region46: #{tpu_custom_call.1} parent=1 // pred_check
      _
    $region47: #{tpu_custom_call.1} parent=1 // pred_check_branch
      %1506 = sbr.rel (0) target = $region49
    $region48: #{tpu_custom_call.1} parent=1 // pred_region
      %s1508 = ssub.s32 512, 512
      %1509 = vsyncadd [#allocation5], %s1508
      %s1510 = sshll.u32 [#allocation8], 4
      %s1511 = int_to_ptr.vmem [resolvable:$true] %s1510
      %1516 = dma.vmem_to_hbm [thread:$0]  %s1511, 512, %s9, [#allocation5], 128, 128, 8
    $region49: #{tpu_custom_call.1} parent=1 // pred_fallthru
      _
    // Predicated region
    $region50: #{tpu_custom_call.1} parent=1 // pred_check
      _
    $region51: #{tpu_custom_call.1} parent=1 // pred_check_branch
      %1518 = sbr.rel (0) target = $region53
    $region52: #{tpu_custom_call.1} parent=1 // pred_region
      %1519 = dma.done [#allocation5], 512
    $region53: #{tpu_custom_call.1} parent=1 // pred_fallthru
      _
    %1520 = vsyncpa [#allocation4], 1
    %1521 = vsyncpa [#allocation7], 1
    %1522 = vsyncpa [#allocation5], 1

</llo_original>
